<compile_context>
chip_gen: v6e
topology: v6e:2x2x1
jax: 0.10.0
libtpu: 0.0.40
codegen_flags: <defaults>
</compile_context>

<pallas_src>
import jax
import jax.numpy as jnp
import numpy as np
from jax.experimental import pallas as pl
from jax.experimental.pallas import tpu as pltpu

# ---------------- configuration (small, consistent with the module) ----------------
B = 2
C = 16            # inplane
H = W = 16
RED = 8           # CBAM reduction_ratio
CR = C // RED     # hidden channels in ChannelAttention (=2)
KS = 7            # SpatialAttention kernel size
PAD = (KS - 1) // 2
HW = H * W
C2 = 2 * C


# ------------- spatial-attention 7x7 conv as a band matrix (built outside kernel) ----
def build_sa_band(sa_w):
    """sa_w: (2, KS, KS) conv weight -> band matrix (2*HW, HW) so that
       conv2d(cat(mean, max)) == concat(mean_flat, max_flat) @ band (cross-correlation,
       zero padding PAD, matching nn.Conv2d)."""
    q = jnp.arange(HW)
    p = jnp.arange(HW)
    yq, xq = q // W, q % W                      # output pixel coords
    yp, xp = p // W, p % W                      # input pixel coords
    dy = yp[:, None] - yq[None, :] + PAD        # (HW, HW)
    dx = xp[:, None] - xq[None, :] + PAD
    valid = (dy >= 0) & (dy < KS) & (dx >= 0) & (dx < KS)
    idx = jnp.clip(dy, 0, KS - 1) * KS + jnp.clip(dx, 0, KS - 1)
    w_flat = sa_w.reshape(2, KS * KS)
    band0 = jnp.where(valid, jnp.take(w_flat[0], idx), 0.0)
    band1 = jnp.where(valid, jnp.take(w_flat[1], idx), 0.0)
    return jnp.concatenate([band0, band1], axis=0).astype(jnp.float32)   # (2*HW, HW)


# ---------------- the fused kernel ----------------------------------------------------
def fused_kernel(x1_ref, x2_ref,
                 ca_w1_ref, ca_b1_ref, ca_w2_ref, ca_b2_ref,
                 sa_wband_ref, sa_b_ref,
                 tf_wa_ref, tf_wb_ref, tf_b_ref,
                 tsf_wa_ref, tsf_wb_ref, tsf_b_ref,
                 o_ref):
    x1 = x1_ref[0]                                        # (C, HW) lane-dense
    x2 = x2_ref[0]

    # ---- TF identity: split-weight 1x1 conv over the channel concat (no concat).
    identity = (jnp.dot(tf_wa_ref[...], x1, preferred_element_type=jnp.float32)
                + jnp.dot(tf_wb_ref[...], x2, preferred_element_type=jnp.float32)
                + tf_b_ref[...])                          # (2C, HW)

    # ---- Channel attention (shared SSAE), both branches batched through one MLP.
    pooled = jnp.concatenate(
        [jnp.mean(x1, axis=1, keepdims=True),             # avg branch 1
         jnp.mean(x2, axis=1, keepdims=True),             # avg branch 2
         jnp.max(x1, axis=1, keepdims=True),              # max branch 1
         jnp.max(x2, axis=1, keepdims=True)], axis=1)     # (C, 4)
    h = jnp.maximum(
        jnp.dot(ca_w1_ref[...], pooled, preferred_element_type=jnp.float32)
        + ca_b1_ref[...], 0.0)                            # (CR, 4)
    o = (jnp.dot(ca_w2_ref[...], h, preferred_element_type=jnp.float32)
         + ca_b2_ref[...])                                # (C, 4)
    ca = jax.nn.sigmoid(o[:, 0:2] + o[:, 2:4])            # (C, 2): [branch1, branch2]
    xc1 = x1 * ca[:, 0:1]
    xc2 = x2 * ca[:, 1:2]

    # ---- Spatial attention: 7x7 conv as ONE MXU matmul against the band matrix,
    #      both branches share the same RHS (one LHS row per branch: [mean | max]).
    sa_lhs = jnp.concatenate(
        [jnp.concatenate([jnp.mean(xc1, axis=0, keepdims=True),
                          jnp.max(xc1, axis=0, keepdims=True)], axis=1),
         jnp.concatenate([jnp.mean(xc2, axis=0, keepdims=True),
                          jnp.max(xc2, axis=0, keepdims=True)], axis=1)],
        axis=0)                                           # (2, 2*HW)
    sa = jax.nn.sigmoid(
        jnp.dot(sa_lhs, sa_wband_ref[...], preferred_element_type=jnp.float32)
        + sa_b_ref[...])                                  # (2, HW), bias broadcasts (1,1)
    x1s = xc1 * sa[0:1, :]
    x2s = xc2 * sa[1:2, :]

    # ---- TSF (split-weight 1x1 conv) + identity*TSF + identity, ReLU (inplace in torch,
    #      so the returned tensor IS the relu'd one).
    tsf = (jnp.dot(tsf_wa_ref[...], x1s, preferred_element_type=jnp.float32)
           + jnp.dot(tsf_wb_ref[...], x2s, preferred_element_type=jnp.float32)
           + tsf_b_ref[...])                              # (2C, HW)
    out = identity * tsf + identity
    o_ref[0] = jnp.maximum(out, 0.0)


def tcrpn_siam_forward(x1, x2, p):
    # single reshape at the module boundary -> lane-dense (B, C, HW)
    x1f = x1.reshape(B, C, HW)
    x2f = x2.reshape(B, C, HW)

    sa_wband = build_sa_band(p['sa_w'])                   # (2*HW, HW)
    sa_b = p['sa_b'].reshape(1, 1)                        # (1, 1) VMEM-friendly bias
    tf_wa, tf_wb = p['tf_w'][:, :C], p['tf_w'][:, C:]     # split once, outside the kernel
    tsf_wa, tsf_wb = p['tsf_w'][:, :C], p['tsf_w'][:, C:]

    def full(shape):
        return pl.BlockSpec(shape, lambda b, _s=shape: tuple(0 for _ in _s))

    out = pl.pallas_call(
        fused_kernel,
        out_shape=jax.ShapeDtypeStruct((B, C2, HW), jnp.float32),
        grid=(B,),
        in_specs=[
            pl.BlockSpec((1, C, HW), lambda b: (b, 0, 0)),       # x1
            pl.BlockSpec((1, C, HW), lambda b: (b, 0, 0)),       # x2
            full((CR, C)),                                       # ca_w1
            full((CR, 1)),                                       # ca_b1
            full((C, CR)),                                       # ca_w2
            full((C, 1)),                                        # ca_b2
            full((2 * HW, HW)),                                  # sa band matrix
            full((1, 1)),                                        # sa bias
            full((C2, C)),                                       # tf_w[:, :C]
            full((C2, C)),                                       # tf_w[:, C:]
            full((C2, 1)),                                       # tf_b
            full((C2, C)),                                       # tsf_w[:, :C]
            full((C2, C)),                                       # tsf_w[:, C:]
            full((C2, 1)),                                       # tsf_b
        ],
        out_specs=pl.BlockSpec((1, C2, HW), lambda b: (b, 0, 0)),
        compiler_params=pltpu.CompilerParams(dimension_semantics=("parallel",)),
    )(x1f, x2f,
      p['ca_w1'], p['ca_b1'], p['ca_w2'], p['ca_b2'],
      sa_wband, sa_b,
      tf_wa, tf_wb, p['tf_b'],
      tsf_wa, tsf_wb, p['tsf_b'])
    return out.reshape(B, C2, H, W)


# ---------------- parameters ----------------------------------------------------------
def init_params(key):
    ks = jax.random.split(key, 8)
    return {
        'ca_w1': 0.2 * jax.random.normal(ks[0], (CR, C), jnp.float32),
        'ca_b1': 0.1 * jax.random.normal(ks[1], (CR, 1), jnp.float32),
        'ca_w2': 0.2 * jax.random.normal(ks[2], (C, CR), jnp.float32),
        'ca_b2': 0.1 * jax.random.normal(ks[3], (C, 1), jnp.float32),
        'sa_w': 0.1 * jax.random.normal(ks[4], (2, KS, KS), jnp.float32),
        'sa_b': jnp.zeros((1,), jnp.float32),
        'tf_w': 0.1 * jax.random.normal(ks[5], (C2, C2), jnp.float32),
        'tf_b': 0.05 * jax.random.normal(ks[6], (C2, 1), jnp.float32),
        'tsf_w': 0.1 * jax.random.normal(ks[7], (C2, C2), jnp.float32),
        'tsf_b': jnp.zeros((C2, 1), jnp.float32),
    }


# ---------------- pure-JAX reference for the correctness check ------------------------
def ref_cbam(x, p):
    avg = jnp.mean(x, axis=(2, 3))
    mx = jnp.max(x, axis=(2, 3))

    def mlp(v):
        h = jnp.maximum(v @ p['ca_w1'].T + p['ca_b1'][:, 0][None, :], 0.0)
        return h @ p['ca_w2'].T + p['ca_b2'][:, 0][None, :]

    ca = jax.nn.sigmoid(mlp(avg) + mlp(mx))
    xc = x * ca[:, :, None, None]
    mean_c = jnp.mean(xc, axis=1, keepdims=True)
    max_c = jnp.max(xc, axis=1, keepdims=True)
    cat = jnp.concatenate([mean_c, max_c], axis=1)
    w = p['sa_w'][None]                                    # (1, 2, KS, KS)
    conv = jax.lax.conv_general_dilated(cat, w, (1, 1), [(PAD, PAD), (PAD, PAD)],
                                        dimension_numbers=('NCHW', 'OIHW', 'NCHW'))
    sa = jax.nn.sigmoid(conv + p['sa_b'][0])
    return xc * sa


def ref_tst(x1, x2, w, b):
    cat = jnp.concatenate([x1, x2], axis=1)
    out = jnp.einsum('oi,bihw->bohw', w, cat)
    return out + b[:, 0][None, :, None, None]


def ref_forward(x1, x2, p):
    identity = ref_tst(x1, x2, p['tf_w'], p['tf_b'])
    x1c = ref_cbam(x1, p)
    x2c = ref_cbam(x2, p)
    tsf = ref_tst(x1c, x2c, p['tsf_w'], p['tsf_b'])
    out = identity * tsf + identity
    return jnp.maximum(out, 0.0)       # nn.ReLU(inplace=True) mutates the returned tensor


# ---------------- main -----------------------------------------------------------------
if __name__ == "__main__":
    key = jax.random.PRNGKey(0)
    k1, k2, kp = jax.random.split(key, 3)
    x1 = jax.random.normal(k1, (B, C, H, W), jnp.float32)
    x2 = jax.random.normal(k2, (B, C, H, W), jnp.float32)
    params = init_params(kp)

    out = jax.jit(tcrpn_siam_forward)(x1, x2, params)
    out = jax.block_until_ready(out)

    ref = jax.block_until_ready(ref_forward(x1, x2, params))
    np.testing.assert_allclose(np.asarray(out), np.asarray(ref), rtol=1e-4, atol=1e-4)

    print("KERNEL_OK")
</pallas_src>

<mosaic_0001>
module attributes {stable_mosaic.version = 11 : i64} {
  func.func @fused_kernel(%arg0: i32, %arg1: memref<1x16x256xf32, #tpu.memory_space<vmem>>, %arg2: memref<1x16x256xf32, #tpu.memory_space<vmem>>, %arg3: memref<2x16xf32, #tpu.memory_space<vmem>>, %arg4: memref<2x1xf32, #tpu.memory_space<vmem>>, %arg5: memref<16x2xf32, #tpu.memory_space<vmem>>, %arg6: memref<16x1xf32, #tpu.memory_space<vmem>>, %arg7: memref<512x256xf32, #tpu.memory_space<vmem>>, %arg8: memref<1x1xf32, #tpu.memory_space<vmem>>, %arg9: memref<32x16xf32, #tpu.memory_space<vmem>>, %arg10: memref<32x16xf32, #tpu.memory_space<vmem>>, %arg11: memref<32x1xf32, #tpu.memory_space<vmem>>, %arg12: memref<32x16xf32, #tpu.memory_space<vmem>>, %arg13: memref<32x16xf32, #tpu.memory_space<vmem>>, %arg14: memref<32x1xf32, #tpu.memory_space<vmem>>, %arg15: memref<1x32x256xf32, #tpu.memory_space<vmem>>) attributes {dimension_semantics = [#tpu.dimension_semantics<parallel>], iteration_bounds = array<i64: 2>, scalar_prefetch = 0 : i64, scratch_operands = 0 : i64, tpu.core_type = #tpu.core_type<tc>, window_params = [{transform_indices = @transform_0, window_bounds = array<i64: 1, 16, 256>}, {transform_indices = @transform_1, window_bounds = array<i64: 1, 16, 256>}, {pipeline_mode = #tpu.pipeline_mode<synchronous>, transform_indices = @transform_2, window_bounds = array<i64: 2, 16>}, {pipeline_mode = #tpu.pipeline_mode<synchronous>, transform_indices = @transform_3, window_bounds = array<i64: 2, 1>}, {pipeline_mode = #tpu.pipeline_mode<synchronous>, transform_indices = @transform_4, window_bounds = array<i64: 16, 2>}, {pipeline_mode = #tpu.pipeline_mode<synchronous>, transform_indices = @transform_5, window_bounds = array<i64: 16, 1>}, {pipeline_mode = #tpu.pipeline_mode<synchronous>, transform_indices = @transform_6, window_bounds = array<i64: 512, 256>}, {pipeline_mode = #tpu.pipeline_mode<synchronous>, transform_indices = @transform_7, window_bounds = array<i64: 1, 1>}, {pipeline_mode = #tpu.pipeline_mode<synchronous>, transform_indices = @transform_8, window_bounds = array<i64: 32, 16>}, {pipeline_mode = #tpu.pipeline_mode<synchronous>, transform_indices = @transform_9, window_bounds = array<i64: 32, 16>}, {pipeline_mode = #tpu.pipeline_mode<synchronous>, transform_indices = @transform_10, window_bounds = array<i64: 32, 1>}, {pipeline_mode = #tpu.pipeline_mode<synchronous>, transform_indices = @transform_11, window_bounds = array<i64: 32, 16>}, {pipeline_mode = #tpu.pipeline_mode<synchronous>, transform_indices = @transform_12, window_bounds = array<i64: 32, 16>}, {pipeline_mode = #tpu.pipeline_mode<synchronous>, transform_indices = @transform_13, window_bounds = array<i64: 32, 1>}, {transform_indices = @transform_14, window_bounds = array<i64: 1, 32, 256>}]} {
    %c0 = arith.constant 0 : index
    %c0_0 = arith.constant 0 : index
    %c0_1 = arith.constant 0 : index
    %0 = vector.load %arg1[%c0, %c0_0, %c0_1] : memref<1x16x256xf32, #tpu.memory_space<vmem>>, vector<1x16x256xf32>
    %1 = vector.shape_cast %0 : vector<1x16x256xf32> to vector<16x256xf32>
    %c0_2 = arith.constant 0 : index
    %c0_3 = arith.constant 0 : index
    %c0_4 = arith.constant 0 : index
    %2 = vector.load %arg2[%c0_2, %c0_3, %c0_4] : memref<1x16x256xf32, #tpu.memory_space<vmem>>, vector<1x16x256xf32>
    %3 = vector.shape_cast %2 : vector<1x16x256xf32> to vector<16x256xf32>
    %c0_5 = arith.constant 0 : index
    %c0_6 = arith.constant 0 : index
    %4 = vector.load %arg9[%c0_5, %c0_6] : memref<32x16xf32, #tpu.memory_space<vmem>>, vector<32x16xf32>
    %cst = arith.constant dense<0.000000e+00> : vector<32x256xf32>
    %5 = tpu.matmul %4, %1, %cst {dimension_numbers = #tpu.dot_dimension_numbers<[1], [0], [0], [1], [0, 0, 1, 1], [], []>} : vector<32x16xf32>, vector<16x256xf32>, vector<32x256xf32> -> vector<32x256xf32>
    %c0_7 = arith.constant 0 : index
    %c0_8 = arith.constant 0 : index
    %6 = vector.load %arg10[%c0_7, %c0_8] : memref<32x16xf32, #tpu.memory_space<vmem>>, vector<32x16xf32>
    %cst_9 = arith.constant dense<0.000000e+00> : vector<32x256xf32>
    %7 = tpu.matmul %6, %3, %cst_9 {dimension_numbers = #tpu.dot_dimension_numbers<[1], [0], [0], [1], [0, 0, 1, 1], [], []>} : vector<32x16xf32>, vector<16x256xf32>, vector<32x256xf32> -> vector<32x256xf32>
    %8 = arith.addf %5, %7 : vector<32x256xf32>
    %c0_10 = arith.constant 0 : index
    %c0_11 = arith.constant 0 : index
    %9 = vector.load %arg11[%c0_10, %c0_11] : memref<32x1xf32, #tpu.memory_space<vmem>>, vector<32x1xf32>
    %10 = vector.broadcast %9 : vector<32x1xf32> to vector<32x256xf32>
    %11 = arith.addf %8, %10 : vector<32x256xf32>
    %cst_12 = arith.constant dense<0.000000e+00> : vector<16xf32>
    %12 = vector.multi_reduction <add>, %1, %cst_12 [1] : vector<16x256xf32> to vector<16xf32>
    %13 = vector.shape_cast %12 : vector<16xf32> to vector<16x1xf32>
    %cst_13 = arith.constant 2.560000e+02 : f32
    %14 = vector.broadcast %cst_13 : f32 to vector<16x1xf32>
    %15 = arith.divf %13, %14 : vector<16x1xf32>
    %cst_14 = arith.constant dense<0.000000e+00> : vector<16xf32>
    %16 = vector.multi_reduction <add>, %3, %cst_14 [1] : vector<16x256xf32> to vector<16xf32>
    %17 = vector.shape_cast %16 : vector<16xf32> to vector<16x1xf32>
    %cst_15 = arith.constant 2.560000e+02 : f32
    %18 = vector.broadcast %cst_15 : f32 to vector<16x1xf32>
    %19 = arith.divf %17, %18 : vector<16x1xf32>
    %cst_16 = arith.constant dense<0xFF800000> : vector<16xf32>
    %20 = vector.multi_reduction <maximumf>, %1, %cst_16 [1] : vector<16x256xf32> to vector<16xf32>
    %21 = vector.shape_cast %20 : vector<16xf32> to vector<16x1xf32>
    %cst_17 = arith.constant dense<0xFF800000> : vector<16xf32>
    %22 = vector.multi_reduction <maximumf>, %3, %cst_17 [1] : vector<16x256xf32> to vector<16xf32>
    %23 = vector.shape_cast %22 : vector<16xf32> to vector<16x1xf32>
    %24 = tpu.concatenate %15, %19, %21, %23 in 1 : vector<16x1xf32>, vector<16x1xf32>, vector<16x1xf32>, vector<16x1xf32> -> vector<16x4xf32>
    %c0_18 = arith.constant 0 : index
    %c0_19 = arith.constant 0 : index
    %25 = vector.load %arg3[%c0_18, %c0_19] : memref<2x16xf32, #tpu.memory_space<vmem>>, vector<2x16xf32>
    %cst_20 = arith.constant dense<0.000000e+00> : vector<2x4xf32>
    %26 = tpu.matmul %25, %24, %cst_20 {dimension_numbers = #tpu.dot_dimension_numbers<[1], [0], [0], [1], [0, 0, 1, 1], [], []>} : vector<2x16xf32>, vector<16x4xf32>, vector<2x4xf32> -> vector<2x4xf32>
    %c0_21 = arith.constant 0 : index
    %c0_22 = arith.constant 0 : index
    %27 = vector.load %arg4[%c0_21, %c0_22] : memref<2x1xf32, #tpu.memory_space<vmem>>, vector<2x1xf32>
    %28 = vector.broadcast %27 : vector<2x1xf32> to vector<2x4xf32>
    %29 = arith.addf %26, %28 : vector<2x4xf32>
    %cst_23 = arith.constant 0.000000e+00 : f32
    %30 = vector.broadcast %cst_23 : f32 to vector<2x4xf32>
    %31 = arith.maximumf %29, %30 : vector<2x4xf32>
    %c0_24 = arith.constant 0 : index
    %c0_25 = arith.constant 0 : index
    %32 = vector.load %arg5[%c0_24, %c0_25] : memref<16x2xf32, #tpu.memory_space<vmem>>, vector<16x2xf32>
    %cst_26 = arith.constant dense<0.000000e+00> : vector<16x4xf32>
    %33 = tpu.matmul %32, %31, %cst_26 {dimension_numbers = #tpu.dot_dimension_numbers<[1], [0], [0], [1], [0, 0, 1, 1], [], []>} : vector<16x2xf32>, vector<2x4xf32>, vector<16x4xf32> -> vector<16x4xf32>
    %c0_27 = arith.constant 0 : index
    %c0_28 = arith.constant 0 : index
    %34 = vector.load %arg6[%c0_27, %c0_28] : memref<16x1xf32, #tpu.memory_space<vmem>>, vector<16x1xf32>
    %35 = vector.broadcast %34 : vector<16x1xf32> to vector<16x4xf32>
    %36 = arith.addf %33, %35 : vector<16x4xf32>
    %37 = vector.extract_strided_slice %36 {offsets = [0, 0], sizes = [16, 2], strides = [1, 1]} : vector<16x4xf32> to vector<16x2xf32>
    %38 = vector.extract_strided_slice %36 {offsets = [0, 2], sizes = [16, 2], strides = [1, 1]} : vector<16x4xf32> to vector<16x2xf32>
    %39 = arith.addf %37, %38 : vector<16x2xf32>
    %40 = arith.negf %39 : vector<16x2xf32>
    %41 = math.exp %40 : vector<16x2xf32>
    %cst_29 = arith.constant 1.000000e+00 : f32
    %42 = vector.broadcast %cst_29 : f32 to vector<16x2xf32>
    %43 = arith.addf %42, %41 : vector<16x2xf32>
    %44 = arith.divf %42, %43 : vector<16x2xf32>
    %45 = vector.extract_strided_slice %44 {offsets = [0, 0], sizes = [16, 1], strides = [1, 1]} : vector<16x2xf32> to vector<16x1xf32>
    %46 = vector.broadcast %45 : vector<16x1xf32> to vector<16x256xf32>
    %47 = arith.mulf %1, %46 : vector<16x256xf32>
    %48 = vector.extract_strided_slice %44 {offsets = [0, 1], sizes = [16, 1], strides = [1, 1]} : vector<16x2xf32> to vector<16x1xf32>
    %49 = vector.broadcast %48 : vector<16x1xf32> to vector<16x256xf32>
    %50 = arith.mulf %3, %49 : vector<16x256xf32>
    %cst_30 = arith.constant dense<0.000000e+00> : vector<256xf32>
    %51 = vector.multi_reduction <add>, %47, %cst_30 [0] : vector<16x256xf32> to vector<256xf32>
    %52 = vector.shape_cast %51 : vector<256xf32> to vector<1x256xf32>
    %cst_31 = arith.constant 1.600000e+01 : f32
    %53 = vector.broadcast %cst_31 : f32 to vector<1x256xf32>
    %54 = arith.divf %52, %53 : vector<1x256xf32>
    %cst_32 = arith.constant dense<0xFF800000> : vector<256xf32>
    %55 = vector.multi_reduction <maximumf>, %47, %cst_32 [0] : vector<16x256xf32> to vector<256xf32>
    %56 = vector.shape_cast %55 : vector<256xf32> to vector<1x256xf32>
    %57 = tpu.concatenate %54, %56 in 1 : vector<1x256xf32>, vector<1x256xf32> -> vector<1x512xf32>
    %cst_33 = arith.constant dense<0.000000e+00> : vector<256xf32>
    %58 = vector.multi_reduction <add>, %50, %cst_33 [0] : vector<16x256xf32> to vector<256xf32>
    %59 = vector.shape_cast %58 : vector<256xf32> to vector<1x256xf32>
    %cst_34 = arith.constant 1.600000e+01 : f32
    %60 = vector.broadcast %cst_34 : f32 to vector<1x256xf32>
    %61 = arith.divf %59, %60 : vector<1x256xf32>
    %cst_35 = arith.constant dense<0xFF800000> : vector<256xf32>
    %62 = vector.multi_reduction <maximumf>, %50, %cst_35 [0] : vector<16x256xf32> to vector<256xf32>
    %63 = vector.shape_cast %62 : vector<256xf32> to vector<1x256xf32>
    %64 = tpu.concatenate %61, %63 in 1 : vector<1x256xf32>, vector<1x256xf32> -> vector<1x512xf32>
    %65 = tpu.concatenate %57, %64 in 0 : vector<1x512xf32>, vector<1x512xf32> -> vector<2x512xf32>
    %c0_36 = arith.constant 0 : index
    %c0_37 = arith.constant 0 : index
    %66 = vector.load %arg7[%c0_36, %c0_37] : memref<512x256xf32, #tpu.memory_space<vmem>>, vector<512x256xf32>
    %cst_38 = arith.constant dense<0.000000e+00> : vector<2x256xf32>
    %67 = tpu.matmul %65, %66, %cst_38 {dimension_numbers = #tpu.dot_dimension_numbers<[1], [0], [0], [1], [0, 0, 1, 1], [], []>} : vector<2x512xf32>, vector<512x256xf32>, vector<2x256xf32> -> vector<2x256xf32>
    %c0_39 = arith.constant 0 : index
    %c0_40 = arith.constant 0 : index
    %68 = vector.load %arg8[%c0_39, %c0_40] : memref<1x1xf32, #tpu.memory_space<vmem>>, vector<1x1xf32>
    %69 = vector.broadcast %68 : vector<1x1xf32> to vector<2x256xf32>
    %70 = arith.addf %67, %69 : vector<2x256xf32>
    %71 = arith.negf %70 : vector<2x256xf32>
    %72 = math.exp %71 : vector<2x256xf32>
    %cst_41 = arith.constant 1.000000e+00 : f32
    %73 = vector.broadcast %cst_41 : f32 to vector<2x256xf32>
    %74 = arith.addf %73, %72 : vector<2x256xf32>
    %75 = arith.divf %73, %74 : vector<2x256xf32>
    %76 = vector.extract_strided_slice %75 {offsets = [0, 0], sizes = [1, 256], strides = [1, 1]} : vector<2x256xf32> to vector<1x256xf32>
    %77 = vector.broadcast %76 : vector<1x256xf32> to vector<16x256xf32>
    %78 = arith.mulf %47, %77 : vector<16x256xf32>
    %79 = vector.extract_strided_slice %75 {offsets = [1, 0], sizes = [1, 256], strides = [1, 1]} : vector<2x256xf32> to vector<1x256xf32>
    %80 = vector.broadcast %79 : vector<1x256xf32> to vector<16x256xf32>
    %81 = arith.mulf %50, %80 : vector<16x256xf32>
    %c0_42 = arith.constant 0 : index
    %c0_43 = arith.constant 0 : index
    %82 = vector.load %arg12[%c0_42, %c0_43] : memref<32x16xf32, #tpu.memory_space<vmem>>, vector<32x16xf32>
    %cst_44 = arith.constant dense<0.000000e+00> : vector<32x256xf32>
    %83 = tpu.matmul %82, %78, %cst_44 {dimension_numbers = #tpu.dot_dimension_numbers<[1], [0], [0], [1], [0, 0, 1, 1], [], []>} : vector<32x16xf32>, vector<16x256xf32>, vector<32x256xf32> -> vector<32x256xf32>
    %c0_45 = arith.constant 0 : index
    %c0_46 = arith.constant 0 : index
    %84 = vector.load %arg13[%c0_45, %c0_46] : memref<32x16xf32, #tpu.memory_space<vmem>>, vector<32x16xf32>
    %cst_47 = arith.constant dense<0.000000e+00> : vector<32x256xf32>
    %85 = tpu.matmul %84, %81, %cst_47 {dimension_numbers = #tpu.dot_dimension_numbers<[1], [0], [0], [1], [0, 0, 1, 1], [], []>} : vector<32x16xf32>, vector<16x256xf32>, vector<32x256xf32> -> vector<32x256xf32>
    %86 = arith.addf %83, %85 : vector<32x256xf32>
    %c0_48 = arith.constant 0 : index
    %c0_49 = arith.constant 0 : index
    %87 = vector.load %arg14[%c0_48, %c0_49] : memref<32x1xf32, #tpu.memory_space<vmem>>, vector<32x1xf32>
    %88 = vector.broadcast %87 : vector<32x1xf32> to vector<32x256xf32>
    %89 = arith.addf %86, %88 : vector<32x256xf32>
    %90 = arith.mulf %11, %89 : vector<32x256xf32>
    %91 = arith.addf %90, %11 : vector<32x256xf32>
    %cst_50 = arith.constant 0.000000e+00 : f32
    %92 = vector.broadcast %cst_50 : f32 to vector<32x256xf32>
    %93 = arith.maximumf %91, %92 : vector<32x256xf32>
    %c0_51 = arith.constant 0 : index
    %c0_52 = arith.constant 0 : index
    %c0_53 = arith.constant 0 : index
    %94 = vector.load %arg15[%c0_51, %c0_52, %c0_53] : memref<1x32x256xf32, #tpu.memory_space<vmem>>, vector<1x32x256xf32>
    %95 = vector.shape_cast %94 : vector<1x32x256xf32> to vector<32x256xf32>
    %96 = vector.shape_cast %93 : vector<32x256xf32> to vector<1x32x256xf32>
    tpu.vector_store %arg15[%c0_51, %c0_52, %c0_53], %96 {strides = array<i32>} : memref<1x32x256xf32, #tpu.memory_space<vmem>>, vector<1x32x256xf32>,
    return
  }
  func.func @transform_0(%arg0: i32) -> (i32, i32, i32) {
    %c0_i32 = arith.constant 0 : i32
    %c0_i32_0 = arith.constant 0 : i32
    %c0_i32_1 = arith.constant 0 : i32
    return %arg0, %c0_i32, %c0_i32_0 : i32, i32, i32
  }
  func.func @transform_1(%arg0: i32) -> (i32, i32, i32) {
    %c0_i32 = arith.constant 0 : i32
    %c0_i32_0 = arith.constant 0 : i32
    %c0_i32_1 = arith.constant 0 : i32
    return %arg0, %c0_i32, %c0_i32_0 : i32, i32, i32
  }
  func.func @transform_2(%arg0: i32) -> (i32, i32) {
    %c0_i32 = arith.constant 0 : i32
    %c0_i32_0 = arith.constant 0 : i32
    %c0_i32_1 = arith.constant 0 : i32
    return %c0_i32, %c0_i32_0 : i32, i32
  }
  func.func @transform_3(%arg0: i32) -> (i32, i32) {
    %c0_i32 = arith.constant 0 : i32
    %c0_i32_0 = arith.constant 0 : i32
    %c0_i32_1 = arith.constant 0 : i32
    return %c0_i32, %c0_i32_0 : i32, i32
  }
  func.func @transform_4(%arg0: i32) -> (i32, i32) {
    %c0_i32 = arith.constant 0 : i32
    %c0_i32_0 = arith.constant 0 : i32
    %c0_i32_1 = arith.constant 0 : i32
    return %c0_i32, %c0_i32_0 : i32, i32
  }
  func.func @transform_5(%arg0: i32) -> (i32, i32) {
    %c0_i32 = arith.constant 0 : i32
    %c0_i32_0 = arith.constant 0 : i32
    %c0_i32_1 = arith.constant 0 : i32
    return %c0_i32, %c0_i32_0 : i32, i32
  }
  func.func @transform_6(%arg0: i32) -> (i32, i32) {
    %c0_i32 = arith.constant 0 : i32
    %c0_i32_0 = arith.constant 0 : i32
    %c0_i32_1 = arith.constant 0 : i32
    return %c0_i32, %c0_i32_0 : i32, i32
  }
  func.func @transform_7(%arg0: i32) -> (i32, i32) {
    %c0_i32 = arith.constant 0 : i32
    %c0_i32_0 = arith.constant 0 : i32
    %c0_i32_1 = arith.constant 0 : i32
    return %c0_i32, %c0_i32_0 : i32, i32
  }
  func.func @transform_8(%arg0: i32) -> (i32, i32) {
    %c0_i32 = arith.constant 0 : i32
    %c0_i32_0 = arith.constant 0 : i32
    %c0_i32_1 = arith.constant 0 : i32
    return %c0_i32, %c0_i32_0 : i32, i32
  }
  func.func @transform_9(%arg0: i32) -> (i32, i32) {
    %c0_i32 = arith.constant 0 : i32
    %c0_i32_0 = arith.constant 0 : i32
    %c0_i32_1 = arith.constant 0 : i32
    return %c0_i32, %c0_i32_0 : i32, i32
  }
  func.func @transform_10(%arg0: i32) -> (i32, i32) {
    %c0_i32 = arith.constant 0 : i32
    %c0_i32_0 = arith.constant 0 : i32
    %c0_i32_1 = arith.constant 0 : i32
    return %c0_i32, %c0_i32_0 : i32, i32
  }
  func.func @transform_11(%arg0: i32) -> (i32, i32) {
    %c0_i32 = arith.constant 0 : i32
    %c0_i32_0 = arith.constant 0 : i32
    %c0_i32_1 = arith.constant 0 : i32
    return %c0_i32, %c0_i32_0 : i32, i32
  }
  func.func @transform_12(%arg0: i32) -> (i32, i32) {
    %c0_i32 = arith.constant 0 : i32
    %c0_i32_0 = arith.constant 0 : i32
    %c0_i32_1 = arith.constant 0 : i32
    return %c0_i32, %c0_i32_0 : i32, i32
  }
  func.func @transform_13(%arg0: i32) -> (i32, i32) {
    %c0_i32 = arith.constant 0 : i32
    %c0_i32_0 = arith.constant 0 : i32
    %c0_i32_1 = arith.constant 0 : i32
    return %c0_i32, %c0_i32_0 : i32, i32
  }
  func.func @transform_14(%arg0: i32) -> (i32, i32, i32) {
    %c0_i32 = arith.constant 0 : i32
    %c0_i32_0 = arith.constant 0 : i32
    %c0_i32_1 = arith.constant 0 : i32
    return %arg0, %c0_i32, %c0_i32_0 : i32, i32, i32
  }
}

</mosaic_0001>

<llo_original>
// kernel: squeeze.2
$region0: #{squeeze.2}
  %s0 = inlined_call_operand.vmem [shape: f32[7,7], index: 0, kind: input, shape index: {}]
  %s1 = inlined_call_operand.vmem [shape: f32[49], index: 1, kind: output, shape index: {}]
  $region1: #{squeeze.2} parent=0
    #allocation0 [shape = 'u8[4096]{0}', space=vmem, size = 0x1000, scoped, tag = 'scoped mem for output reshape']
    %v2 = vld [vmem:[%s0] sm:$0x1]
    %vm3 = vcmask 56320
    %4 = vst.msk [vmem:[#allocation0] sm:$0x1] %vm3, %v2
    %s5 = scalar_lea.vmem %s0, 6
    %v6 = vld [vmem:[%s5] sm:$0x1]
    %7 = vrot.lane.b32.xlu0 %v6, 42
    %v8 = vpop.permute.xlu0 %7
    %vm9 = vcmask 400720
    %10 = vst.msk [vmem:[#allocation0] sm:$0x1] %vm9, %v8
    %s11 = scalar_lea.vmem %s0, 5
    %v12 = vld [vmem:[%s11] sm:$0x1]
    %13 = vrot.lane.b32.xlu0 %v12, 35
    %v14 = vpop.permute.xlu0 %13
    %vm15 = vcmask 343320
    %16 = vst.msk [vmem:[#allocation0] sm:$0x1] %vm15, %v14
    %s17 = scalar_lea.vmem %s0, 4
    %v18 = vld [vmem:[%s17] sm:$0x1]
    %19 = vrot.lane.b32.xlu0 %v18, 28
    %v20 = vpop.permute.xlu0 %19
    %vm21 = vcmask 285920
    %22 = vst.msk [vmem:[#allocation0] sm:$0x1] %vm21, %v20
    %s23 = scalar_lea.vmem %s0, 3
    %v24 = vld [vmem:[%s23] sm:$0x1]
    %25 = vrot.lane.b32.xlu0 %v24, 21
    %v26 = vpop.permute.xlu0 %25
    %vm27 = vcmask 228520
    %28 = vst.msk [vmem:[#allocation0] sm:$0x1] %vm27, %v26
    %s29 = scalar_lea.vmem %s0, 2
    %v30 = vld [vmem:[%s29] sm:$0x1]
    %31 = vrot.lane.b32.xlu0 %v30, 14
    %v32 = vpop.permute.xlu0 %31
    %vm33 = vcmask 171120
    %34 = vst.msk [vmem:[#allocation0] sm:$0x1] %vm33, %v32
    %s35 = scalar_lea.vmem %s0, 1
    %v36 = vld [vmem:[%s35] sm:$0x1]
    %37 = vrot.lane.b32.xlu0 %v36, 7
    %v38 = vpop.permute.xlu0 %37
    %vm39 = vcmask 113720
    %40 = vst.msk [vmem:[#allocation0] sm:$0x1] %vm39, %v38
    %s42 = sshll.u32 1, 1
    %s43 = ssub.s32 %s42, 1
    %v45 = vld [vmem:[#allocation0] sm:%s43]
    %s46 = sshll.u32 1, 1
    %s47 = ssub.s32 %s46, 1
    %48 = vst [vmem:[%s1] sm:%s47] %v45

// kernel: tcrpn_siam_forward.1
$region0: #{tcrpn_siam_forward.1}
  #allocation0 [shape = 'u32[]', space=smem, size = 0x4, offset = 0x4, fixed_abs, tag = 'smem constant byte address 0x4 - core index']
  #allocation1 [shape = 'u32[144,128]{1,0:T(1,128)}', space=vmem, size = 0x12000, scoped, tag = 'internal scratch']
  #allocation2 [shape = 'f32[1,1]{1,0:T(1,128)S(1)}', space=vmem, size = 0x200, scoped, tag = 'scoped memory for tcrpn_siam_forward.1']
  %s0 = inlined_call_operand.vmem [shape: f32[2,16,256], index: 0, kind: input, shape index: {}]
  %s1 = inlined_call_operand.vmem [shape: f32[2,16,256], index: 1, kind: input, shape index: {}]
  %s2 = inlined_call_operand.vmem [shape: f32[2,16], index: 2, kind: input, shape index: {}]
  %s3 = inlined_call_operand.vmem [shape: f32[2,1], index: 3, kind: input, shape index: {}]
  %s4 = inlined_call_operand.vmem [shape: f32[16,2], index: 4, kind: input, shape index: {}]
  %s5 = inlined_call_operand.vmem [shape: f32[16,1], index: 5, kind: input, shape index: {}]
  %s6 = inlined_call_operand.vmem [shape: f32[512,256], index: 6, kind: input, shape index: {}]
  %s7 = inlined_call_operand.<no memory space> [shape: f32[1,1], index: 7, kind: input, shape index: {}]
  %s8 = inlined_call_operand.vmem [shape: f32[32,16], index: 8, kind: input, shape index: {}]
  %s9 = inlined_call_operand.vmem [shape: f32[32,16], index: 9, kind: input, shape index: {}]
  %s10 = inlined_call_operand.vmem [shape: f32[32,1], index: 10, kind: input, shape index: {}]
  %s11 = inlined_call_operand.vmem [shape: f32[32,16], index: 11, kind: input, shape index: {}]
  %s12 = inlined_call_operand.vmem [shape: f32[32,16], index: 12, kind: input, shape index: {}]
  %s13 = inlined_call_operand.vmem [shape: f32[32,1], index: 13, kind: input, shape index: {}]
  %s14 = inlined_call_operand.vmem [shape: f32[2,32,256], index: 14, kind: output, shape index: {}]
  %s15 = sld [smem:[#allocation0]]
  $region89: #{tcrpn_siam_forward.1} parent=0
    _
  %s17 = ssub.s32 1, %s15
  %s18 = scalar_select 0, %s17, %s15
  %v19 = vstv %s7
  %20 = vst [vmem:[#allocation2] sm:$0x1] %v19
  loop: start=0, step=1, limit=4
  $region2: #{tcrpn_siam_forward.1} parent=0 // loop_pre_header
    _
  $region3: #{tcrpn_siam_forward.1} parent=0 // loop_header
    %s22 = sphi 0, %s26
    %p23 = scmp.ge.s32.totalorder %s22, 4
    %s32 = sphi 0, %s34
    %s35 = sphi 0, %s32
    %s36 = sphi 0, %s35
    %s52 = sphi 0, %s36
    %s58 = sphi 0, %s60
    %s61 = sphi 0, %s58
    %s62 = sphi 0, %s61
    %s78 = sphi 0, %s62
    %s82 = sphi 0, %s82
    %s84 = sphi 0, %s82
    %s85 = sphi 0, %s84
    %s99 = sphi 0, %s85
    %s103 = sphi 0, %s103
    %s105 = sphi 0, %s103
    %s106 = sphi 0, %s105
    %s120 = sphi 0, %s106
    %s124 = sphi 0, %s124
    %s126 = sphi 0, %s124
    %s127 = sphi 0, %s126
    %s141 = sphi 0, %s127
    %s145 = sphi 0, %s145
    %s147 = sphi 0, %s145
    %s148 = sphi 0, %s147
    %s162 = sphi 0, %s148
    %s166 = sphi 0, %s166
    %s168 = sphi 0, %s166
    %s169 = sphi 0, %s168
    %s183 = sphi 0, %s169
    %s187 = sphi 0, %s187
    %s189 = sphi 0, %s187
    %s190 = sphi 0, %s189
    %s204 = sphi 0, %s190
    %s208 = sphi 0, %s208
    %s210 = sphi 0, %s208
    %s211 = sphi 0, %s210
    %s225 = sphi 0, %s211
    %s229 = sphi 0, %s229
    %s231 = sphi 0, %s229
    %s232 = sphi 0, %s231
    %s246 = sphi 0, %s232
    %s250 = sphi 0, %s250
    %s252 = sphi 0, %s250
    %s253 = sphi 0, %s252
    %s267 = sphi 0, %s253
    %s271 = sphi 0, %s271
    %s273 = sphi 0, %s271
    %s274 = sphi 0, %s273
    %s288 = sphi 0, %s274
    %s292 = sphi 0, %s292
    %s294 = sphi 0, %s292
    %s295 = sphi 0, %s294
    %s309 = sphi 0, %s295
    %s313 = sphi 0, %s313
    %s315 = sphi 0, %s313
    %s316 = sphi 0, %s315
    %s330 = sphi 0, %s316
    %s336 = sphi 0, %s338
    %s339 = sphi 0, %s336
    %s340 = sphi 0, %s339
    %s356 = sphi 0, %s340
  $region4: #{tcrpn_siam_forward.1} parent=0 // loop_header_branch
    %25 = sbr.rel (%p23) target = $region8
  $region5: #{tcrpn_siam_forward.1} parent=0 // loop_body
    %s27 = ssub.s32 %s22, 1
    %s28 = ssub.s32 %s22, 2
    %s29 = sadd.s32 %s22, 1
    %s30 = ssub.s32 %s22, %s29
    %p31 = scmp.eq.s32.totalorder %s30, 0
    %s33 = sadd.s32 %s32, 1
    %s34 = scalar_select %p31, %s32, %s33
    %p37 = pneg %p31
    %p38 = scmp.eq.s32.totalorder %s22, 1
    %p39 = por %p37, %p38
    %p40 = scmp.ne.s32.totalorder %s32, %s35
    %p41 = scmp.eq.s32.totalorder %s22, 0
    %p42 = por %p40, %p41
    %p43 = scmp.ne.s32.totalorder %s32, %s35
    %p44 = scmp.eq.s32.totalorder %s27, 1
    %p45 = por %p43, %p44
    %p46 = scmp.ne.s32.totalorder %s35, %s36
    %p47 = scmp.eq.s32.totalorder %s27, 0
    %p48 = por %p46, %p47
    %p49 = scmp.ne.s32.totalorder %s35, %s36
    %p50 = scmp.eq.s32.totalorder %s28, 1
    %p51 = por %p49, %p50
    %p53 = scmp.ne.s32.totalorder %s36, %s52
    %p54 = scmp.eq.s32.totalorder %s28, 0
    %p55 = por %p53, %p54
    %s56 = ssub.s32 %s22, %s29
    %p57 = scmp.eq.s32.totalorder %s56, 0
    %s59 = sadd.s32 %s58, 1
    %s60 = scalar_select %p57, %s58, %s59
    %p63 = pneg %p57
    %p64 = scmp.eq.s32.totalorder %s22, 1
    %p65 = por %p63, %p64
    %p66 = scmp.ne.s32.totalorder %s58, %s61
    %p67 = scmp.eq.s32.totalorder %s22, 0
    %p68 = por %p66, %p67
    %p69 = scmp.ne.s32.totalorder %s58, %s61
    %p70 = scmp.eq.s32.totalorder %s27, 1
    %p71 = por %p69, %p70
    %p72 = scmp.ne.s32.totalorder %s61, %s62
    %p73 = scmp.eq.s32.totalorder %s27, 0
    %p74 = por %p72, %p73
    %p75 = scmp.ne.s32.totalorder %s61, %s62
    %p76 = scmp.eq.s32.totalorder %s28, 1
    %p77 = por %p75, %p76
    %p79 = scmp.ne.s32.totalorder %s62, %s78
    %p80 = scmp.eq.s32.totalorder %s28, 0
    %p81 = por %p79, %p80
    %s83 = sadd.s32 %s82, 1
    %p86 = scmp.eq.s32.totalorder %s22, 1
    %p87 = scmp.ne.s32.totalorder %s82, %s84
    %p88 = scmp.eq.s32.totalorder %s22, 0
    %p89 = por %p87, %p88
    %p90 = scmp.ne.s32.totalorder %s82, %s84
    %p91 = scmp.eq.s32.totalorder %s27, 1
    %p92 = por %p90, %p91
    %p93 = scmp.ne.s32.totalorder %s84, %s85
    %p94 = scmp.eq.s32.totalorder %s27, 0
    %p95 = por %p93, %p94
    %p96 = scmp.ne.s32.totalorder %s84, %s85
    %p97 = scmp.eq.s32.totalorder %s28, 1
    %p98 = por %p96, %p97
    %p100 = scmp.ne.s32.totalorder %s85, %s99
    %p101 = scmp.eq.s32.totalorder %s28, 0
    %p102 = por %p100, %p101
    %s104 = sadd.s32 %s103, 1
    %p107 = scmp.eq.s32.totalorder %s22, 1
    %p108 = scmp.ne.s32.totalorder %s103, %s105
    %p109 = scmp.eq.s32.totalorder %s22, 0
    %p110 = por %p108, %p109
    %p111 = scmp.ne.s32.totalorder %s103, %s105
    %p112 = scmp.eq.s32.totalorder %s27, 1
    %p113 = por %p111, %p112
    %p114 = scmp.ne.s32.totalorder %s105, %s106
    %p115 = scmp.eq.s32.totalorder %s27, 0
    %p116 = por %p114, %p115
    %p117 = scmp.ne.s32.totalorder %s105, %s106
    %p118 = scmp.eq.s32.totalorder %s28, 1
    %p119 = por %p117, %p118
    %p121 = scmp.ne.s32.totalorder %s106, %s120
    %p122 = scmp.eq.s32.totalorder %s28, 0
    %p123 = por %p121, %p122
    %s125 = sadd.s32 %s124, 1
    %p128 = scmp.eq.s32.totalorder %s22, 1
    %p129 = scmp.ne.s32.totalorder %s124, %s126
    %p130 = scmp.eq.s32.totalorder %s22, 0
    %p131 = por %p129, %p130
    %p132 = scmp.ne.s32.totalorder %s124, %s126
    %p133 = scmp.eq.s32.totalorder %s27, 1
    %p134 = por %p132, %p133
    %p135 = scmp.ne.s32.totalorder %s126, %s127
    %p136 = scmp.eq.s32.totalorder %s27, 0
    %p137 = por %p135, %p136
    %p138 = scmp.ne.s32.totalorder %s126, %s127
    %p139 = scmp.eq.s32.totalorder %s28, 1
    %p140 = por %p138, %p139
    %p142 = scmp.ne.s32.totalorder %s127, %s141
    %p143 = scmp.eq.s32.totalorder %s28, 0
    %p144 = por %p142, %p143
    %s146 = sadd.s32 %s145, 1
    %p149 = scmp.eq.s32.totalorder %s22, 1
    %p150 = scmp.ne.s32.totalorder %s145, %s147
    %p151 = scmp.eq.s32.totalorder %s22, 0
    %p152 = por %p150, %p151
    %p153 = scmp.ne.s32.totalorder %s145, %s147
    %p154 = scmp.eq.s32.totalorder %s27, 1
    %p155 = por %p153, %p154
    %p156 = scmp.ne.s32.totalorder %s147, %s148
    %p157 = scmp.eq.s32.totalorder %s27, 0
    %p158 = por %p156, %p157
    %p159 = scmp.ne.s32.totalorder %s147, %s148
    %p160 = scmp.eq.s32.totalorder %s28, 1
    %p161 = por %p159, %p160
    %p163 = scmp.ne.s32.totalorder %s148, %s162
    %p164 = scmp.eq.s32.totalorder %s28, 0
    %p165 = por %p163, %p164
    %s167 = sadd.s32 %s166, 1
    %p170 = scmp.eq.s32.totalorder %s22, 1
    %p171 = scmp.ne.s32.totalorder %s166, %s168
    %p172 = scmp.eq.s32.totalorder %s22, 0
    %p173 = por %p171, %p172
    %p174 = scmp.ne.s32.totalorder %s166, %s168
    %p175 = scmp.eq.s32.totalorder %s27, 1
    %p176 = por %p174, %p175
    %p177 = scmp.ne.s32.totalorder %s168, %s169
    %p178 = scmp.eq.s32.totalorder %s27, 0
    %p179 = por %p177, %p178
    %p180 = scmp.ne.s32.totalorder %s168, %s169
    %p181 = scmp.eq.s32.totalorder %s28, 1
    %p182 = por %p180, %p181
    %p184 = scmp.ne.s32.totalorder %s169, %s183
    %p185 = scmp.eq.s32.totalorder %s28, 0
    %p186 = por %p184, %p185
    %s188 = sadd.s32 %s187, 1
    %p191 = scmp.eq.s32.totalorder %s22, 1
    %p192 = scmp.ne.s32.totalorder %s187, %s189
    %p193 = scmp.eq.s32.totalorder %s22, 0
    %p194 = por %p192, %p193
    %p195 = scmp.ne.s32.totalorder %s187, %s189
    %p196 = scmp.eq.s32.totalorder %s27, 1
    %p197 = por %p195, %p196
    %p198 = scmp.ne.s32.totalorder %s189, %s190
    %p199 = scmp.eq.s32.totalorder %s27, 0
    %p200 = por %p198, %p199
    %p201 = scmp.ne.s32.totalorder %s189, %s190
    %p202 = scmp.eq.s32.totalorder %s28, 1
    %p203 = por %p201, %p202
    %p205 = scmp.ne.s32.totalorder %s190, %s204
    %p206 = scmp.eq.s32.totalorder %s28, 0
    %p207 = por %p205, %p206
    %s209 = sadd.s32 %s208, 1
    %p212 = scmp.eq.s32.totalorder %s22, 1
    %p213 = scmp.ne.s32.totalorder %s208, %s210
    %p214 = scmp.eq.s32.totalorder %s22, 0
    %p215 = por %p213, %p214
    %p216 = scmp.ne.s32.totalorder %s208, %s210
    %p217 = scmp.eq.s32.totalorder %s27, 1
    %p218 = por %p216, %p217
    %p219 = scmp.ne.s32.totalorder %s210, %s211
    %p220 = scmp.eq.s32.totalorder %s27, 0
    %p221 = por %p219, %p220
    %p222 = scmp.ne.s32.totalorder %s210, %s211
    %p223 = scmp.eq.s32.totalorder %s28, 1
    %p224 = por %p222, %p223
    %p226 = scmp.ne.s32.totalorder %s211, %s225
    %p227 = scmp.eq.s32.totalorder %s28, 0
    %p228 = por %p226, %p227
    %s230 = sadd.s32 %s229, 1
    %p233 = scmp.eq.s32.totalorder %s22, 1
    %p234 = scmp.ne.s32.totalorder %s229, %s231
    %p235 = scmp.eq.s32.totalorder %s22, 0
    %p236 = por %p234, %p235
    %p237 = scmp.ne.s32.totalorder %s229, %s231
    %p238 = scmp.eq.s32.totalorder %s27, 1
    %p239 = por %p237, %p238
    %p240 = scmp.ne.s32.totalorder %s231, %s232
    %p241 = scmp.eq.s32.totalorder %s27, 0
    %p242 = por %p240, %p241
    %p243 = scmp.ne.s32.totalorder %s231, %s232
    %p244 = scmp.eq.s32.totalorder %s28, 1
    %p245 = por %p243, %p244
    %p247 = scmp.ne.s32.totalorder %s232, %s246
    %p248 = scmp.eq.s32.totalorder %s28, 0
    %p249 = por %p247, %p248
    %s251 = sadd.s32 %s250, 1
    %p254 = scmp.eq.s32.totalorder %s22, 1
    %p255 = scmp.ne.s32.totalorder %s250, %s252
    %p256 = scmp.eq.s32.totalorder %s22, 0
    %p257 = por %p255, %p256
    %p258 = scmp.ne.s32.totalorder %s250, %s252
    %p259 = scmp.eq.s32.totalorder %s27, 1
    %p260 = por %p258, %p259
    %p261 = scmp.ne.s32.totalorder %s252, %s253
    %p262 = scmp.eq.s32.totalorder %s27, 0
    %p263 = por %p261, %p262
    %p264 = scmp.ne.s32.totalorder %s252, %s253
    %p265 = scmp.eq.s32.totalorder %s28, 1
    %p266 = por %p264, %p265
    %p268 = scmp.ne.s32.totalorder %s253, %s267
    %p269 = scmp.eq.s32.totalorder %s28, 0
    %p270 = por %p268, %p269
    %s272 = sadd.s32 %s271, 1
    %p275 = scmp.eq.s32.totalorder %s22, 1
    %p276 = scmp.ne.s32.totalorder %s271, %s273
    %p277 = scmp.eq.s32.totalorder %s22, 0
    %p278 = por %p276, %p277
    %p279 = scmp.ne.s32.totalorder %s271, %s273
    %p280 = scmp.eq.s32.totalorder %s27, 1
    %p281 = por %p279, %p280
    %p282 = scmp.ne.s32.totalorder %s273, %s274
    %p283 = scmp.eq.s32.totalorder %s27, 0
    %p284 = por %p282, %p283
    %p285 = scmp.ne.s32.totalorder %s273, %s274
    %p286 = scmp.eq.s32.totalorder %s28, 1
    %p287 = por %p285, %p286
    %p289 = scmp.ne.s32.totalorder %s274, %s288
    %p290 = scmp.eq.s32.totalorder %s28, 0
    %p291 = por %p289, %p290
    %s293 = sadd.s32 %s292, 1
    %p296 = scmp.eq.s32.totalorder %s22, 1
    %p297 = scmp.ne.s32.totalorder %s292, %s294
    %p298 = scmp.eq.s32.totalorder %s22, 0
    %p299 = por %p297, %p298
    %p300 = scmp.ne.s32.totalorder %s292, %s294
    %p301 = scmp.eq.s32.totalorder %s27, 1
    %p302 = por %p300, %p301
    %p303 = scmp.ne.s32.totalorder %s294, %s295
    %p304 = scmp.eq.s32.totalorder %s27, 0
    %p305 = por %p303, %p304
    %p306 = scmp.ne.s32.totalorder %s294, %s295
    %p307 = scmp.eq.s32.totalorder %s28, 1
    %p308 = por %p306, %p307
    %p310 = scmp.ne.s32.totalorder %s295, %s309
    %p311 = scmp.eq.s32.totalorder %s28, 0
    %p312 = por %p310, %p311
    %s314 = sadd.s32 %s313, 1
    %p317 = scmp.eq.s32.totalorder %s22, 1
    %p318 = scmp.ne.s32.totalorder %s313, %s315
    %p319 = scmp.eq.s32.totalorder %s22, 0
    %p320 = por %p318, %p319
    %p321 = scmp.ne.s32.totalorder %s313, %s315
    %p322 = scmp.eq.s32.totalorder %s27, 1
    %p323 = por %p321, %p322
    %p324 = scmp.ne.s32.totalorder %s315, %s316
    %p325 = scmp.eq.s32.totalorder %s27, 0
    %p326 = por %p324, %p325
    %p327 = scmp.ne.s32.totalorder %s315, %s316
    %p328 = scmp.eq.s32.totalorder %s28, 1
    %p329 = por %p327, %p328
    %p331 = scmp.ne.s32.totalorder %s316, %s330
    %p332 = scmp.eq.s32.totalorder %s28, 0
    %p333 = por %p331, %p332
    %s334 = ssub.s32 %s22, %s29
    %p335 = scmp.eq.s32.totalorder %s334, 0
    %s337 = sadd.s32 %s336, 1
    %s338 = scalar_select %p335, %s336, %s337
    %p341 = pneg %p335
    %p342 = scmp.eq.s32.totalorder %s22, 1
    %p343 = por %p341, %p342
    %p344 = scmp.ne.s32.totalorder %s336, %s339
    %p345 = scmp.eq.s32.totalorder %s22, 0
    %p346 = por %p344, %p345
    %p347 = scmp.ne.s32.totalorder %s336, %s339
    %p348 = scmp.eq.s32.totalorder %s27, 1
    %p349 = por %p347, %p348
    %p350 = scmp.ne.s32.totalorder %s339, %s340
    %p351 = scmp.eq.s32.totalorder %s27, 0
    %p352 = por %p350, %p351
    %p353 = scmp.ne.s32.totalorder %s339, %s340
    %p354 = scmp.eq.s32.totalorder %s28, 1
    %p355 = por %p353, %p354
    %p357 = scmp.ne.s32.totalorder %s340, %s356
    %p358 = scmp.eq.s32.totalorder %s28, 0
    %p359 = por %p357, %p358
    %p360 = scmp.le.s32.totalorder 1, %s22
    %p361 = scmp.lt.s32.totalorder %s22, 3
    %p362 = pnand %p360, %p361
    %p363 = pneg %p362
    // Predicated region
    $region9: #{tcrpn_siam_forward.1} parent=5 // pred_check
      _
    $region10: #{tcrpn_siam_forward.1} parent=5 // pred_check_branch
      %365 = sbr.rel (%p362) target = $region12
    $region11: #{tcrpn_siam_forward.1} parent=5 // pred_region
      %s366 = ssub.s32 %s22, 1
      // Predicated region
      $region13: #{tcrpn_siam_forward.1} parent=11 // pred_check
        %p367 = pneg %p95
      $region14: #{tcrpn_siam_forward.1} parent=11 // pred_check_branch
        %369 = sbr.rel (%p367) target = $region16
      $region15: #{tcrpn_siam_forward.1} parent=11 // pred_region
        _
      $region16: #{tcrpn_siam_forward.1} parent=11 // pred_fallthru
        _
      // Predicated region
      $region17: #{tcrpn_siam_forward.1} parent=11 // pred_check
        %p370 = pneg %p116
      $region18: #{tcrpn_siam_forward.1} parent=11 // pred_check_branch
        %372 = sbr.rel (%p370) target = $region20
      $region19: #{tcrpn_siam_forward.1} parent=11 // pred_region
        _
      $region20: #{tcrpn_siam_forward.1} parent=11 // pred_fallthru
        _
      // Predicated region
      $region21: #{tcrpn_siam_forward.1} parent=11 // pred_check
        %p373 = pneg %p137
      $region22: #{tcrpn_siam_forward.1} parent=11 // pred_check_branch
        %375 = sbr.rel (%p373) target = $region24
      $region23: #{tcrpn_siam_forward.1} parent=11 // pred_region
        _
      $region24: #{tcrpn_siam_forward.1} parent=11 // pred_fallthru
        _
      // Predicated region
      $region25: #{tcrpn_siam_forward.1} parent=11 // pred_check
        %p376 = pneg %p158
      $region26: #{tcrpn_siam_forward.1} parent=11 // pred_check_branch
        %378 = sbr.rel (%p376) target = $region28
      $region27: #{tcrpn_siam_forward.1} parent=11 // pred_region
        _
      $region28: #{tcrpn_siam_forward.1} parent=11 // pred_fallthru
        _
      // Predicated region
      $region29: #{tcrpn_siam_forward.1} parent=11 // pred_check
        %p379 = pneg %p179
      $region30: #{tcrpn_siam_forward.1} parent=11 // pred_check_branch
        %381 = sbr.rel (%p379) target = $region32
      $region31: #{tcrpn_siam_forward.1} parent=11 // pred_region
        _
      $region32: #{tcrpn_siam_forward.1} parent=11 // pred_fallthru
        _
      // Predicated region
      $region33: #{tcrpn_siam_forward.1} parent=11 // pred_check
        %p382 = pneg %p200
      $region34: #{tcrpn_siam_forward.1} parent=11 // pred_check_branch
        %384 = sbr.rel (%p382) target = $region36
      $region35: #{tcrpn_siam_forward.1} parent=11 // pred_region
        _
      $region36: #{tcrpn_siam_forward.1} parent=11 // pred_fallthru
        _
      // Predicated region
      $region37: #{tcrpn_siam_forward.1} parent=11 // pred_check
        %p385 = pneg %p221
      $region38: #{tcrpn_siam_forward.1} parent=11 // pred_check_branch
        %387 = sbr.rel (%p385) target = $region40
      $region39: #{tcrpn_siam_forward.1} parent=11 // pred_region
        _
      $region40: #{tcrpn_siam_forward.1} parent=11 // pred_fallthru
        _
      // Predicated region
      $region41: #{tcrpn_siam_forward.1} parent=11 // pred_check
        %p388 = pneg %p242
      $region42: #{tcrpn_siam_forward.1} parent=11 // pred_check_branch
        %390 = sbr.rel (%p388) target = $region44
      $region43: #{tcrpn_siam_forward.1} parent=11 // pred_region
        _
      $region44: #{tcrpn_siam_forward.1} parent=11 // pred_fallthru
        _
      // Predicated region
      $region45: #{tcrpn_siam_forward.1} parent=11 // pred_check
        %p391 = pneg %p263
      $region46: #{tcrpn_siam_forward.1} parent=11 // pred_check_branch
        %393 = sbr.rel (%p391) target = $region48
      $region47: #{tcrpn_siam_forward.1} parent=11 // pred_region
        _
      $region48: #{tcrpn_siam_forward.1} parent=11 // pred_fallthru
        _
      // Predicated region
      $region49: #{tcrpn_siam_forward.1} parent=11 // pred_check
        %p394 = pneg %p284
      $region50: #{tcrpn_siam_forward.1} parent=11 // pred_check_branch
        %396 = sbr.rel (%p394) target = $region52
      $region51: #{tcrpn_siam_forward.1} parent=11 // pred_region
        _
      $region52: #{tcrpn_siam_forward.1} parent=11 // pred_fallthru
        _
      // Predicated region
      $region53: #{tcrpn_siam_forward.1} parent=11 // pred_check
        %p397 = pneg %p305
      $region54: #{tcrpn_siam_forward.1} parent=11 // pred_check_branch
        %399 = sbr.rel (%p397) target = $region56
      $region55: #{tcrpn_siam_forward.1} parent=11 // pred_region
        _
      $region56: #{tcrpn_siam_forward.1} parent=11 // pred_fallthru
        _
      // Predicated region
      $region57: #{tcrpn_siam_forward.1} parent=11 // pred_check
        %p400 = pneg %p326
      $region58: #{tcrpn_siam_forward.1} parent=11 // pred_check_branch
        %402 = sbr.rel (%p400) target = $region60
      $region59: #{tcrpn_siam_forward.1} parent=11 // pred_region
        _
      $region60: #{tcrpn_siam_forward.1} parent=11 // pred_fallthru
        _
    $region12: #{tcrpn_siam_forward.1} parent=5 // pred_fallthru
      _
    %p403 = scmp.lt.s32.totalorder %s22, 2
    // Predicated region
    $region61: #{tcrpn_siam_forward.1} parent=5 // pred_check
      %p404 = pneg %p403
    $region62: #{tcrpn_siam_forward.1} parent=5 // pred_check_branch
      %406 = sbr.rel (%p404) target = $region64
    $region63: #{tcrpn_siam_forward.1} parent=5 // pred_region
      // Predicated region
      $region65: #{tcrpn_siam_forward.1} parent=63 // pred_check
        %p407 = pneg %p42
      $region66: #{tcrpn_siam_forward.1} parent=63 // pred_check_branch
        %409 = sbr.rel (%p407) target = $region68
      $region67: #{tcrpn_siam_forward.1} parent=63 // pred_region
        %p410 = scmp.lt.s32.totalorder %s22, 1
        %s411 = scalar_select %p410, %s22, 1
        %s412 = smul.addr %s411, 4
        %s413 = smul.addr %s412, 8
        %s414 = scalar_lea.vmem %s0, %s413
      $region68: #{tcrpn_siam_forward.1} parent=63 // pred_fallthru
        _
      // Predicated region
      $region69: #{tcrpn_siam_forward.1} parent=63 // pred_check
        %p415 = pneg %p68
      $region70: #{tcrpn_siam_forward.1} parent=63 // pred_check_branch
        %417 = sbr.rel (%p415) target = $region72
      $region71: #{tcrpn_siam_forward.1} parent=63 // pred_region
        %p418 = scmp.lt.s32.totalorder %s22, 1
        %s419 = scalar_select %p418, %s22, 1
        %s420 = smul.addr %s419, 4
        %s421 = smul.addr %s420, 8
        %s422 = scalar_lea.vmem %s1, %s421
      $region72: #{tcrpn_siam_forward.1} parent=63 // pred_fallthru
        _
    $region64: #{tcrpn_siam_forward.1} parent=5 // pred_fallthru
      _
    %p423 = scmp.le.s32.totalorder 1, %s22
    %p424 = scmp.lt.s32.totalorder %s22, 3
    %p425 = pnand %p423, %p424
    %p426 = pneg %p425
    // Predicated region
    $region73: #{tcrpn_siam_forward.1} parent=5 // pred_check
      _
    $region74: #{tcrpn_siam_forward.1} parent=5 // pred_check_branch
      %428 = sbr.rel (%p425) target = $region76
    $region75: #{tcrpn_siam_forward.1} parent=5 // pred_region
      %s429 = ssub.s32 %s22, 1
      %p430 = scmp.lt.s32.totalorder %s27, 1
      %s431 = scalar_select %p430, %s27, 1
      %s432 = smul.addr %s431, 4
      %s433 = smul.addr %s432, 8
      %s434 = scalar_lea.vmem %s0, %s433
      %p435 = pneg %p48
      %p436 = pneg %p45
      %p437 = scmp.lt.s32.totalorder %s27, 1
      %s438 = scalar_select %p437, %s27, 1
      %s439 = smul.addr %s438, 4
      %s440 = smul.addr %s439, 8
      %s441 = scalar_lea.vmem %s1, %s440
      %p442 = pneg %p74
      %p443 = pneg %p71
      %p444 = pneg %p95
      %p445 = pneg %p92
      %p446 = pneg %p116
      %p447 = pneg %p113
      %p448 = pneg %p137
      %p449 = pneg %p134
      %p450 = pneg %p158
      %p451 = pneg %p155
      %p452 = pneg %p179
      %p453 = pneg %p176
      %p454 = pneg %p200
      %p455 = pneg %p197
      %p456 = pneg %p221
      %p457 = pneg %p218
      %p458 = pneg %p242
      %p459 = pneg %p239
      %p460 = pneg %p263
      %p461 = pneg %p260
      %p462 = pneg %p284
      %p463 = pneg %p281
      %p464 = pneg %p305
      %p465 = pneg %p302
      %p466 = pneg %p326
      %p467 = pneg %p323
      %p468 = pneg %p352
      %p469 = pneg %p349
      %p470 = scmp.lt.s32.totalorder %s27, 1
      %s471 = scalar_select %p470, %s27, 1
      %s472 = smul.addr %s471, 8
      %s473 = smul.addr %s472, 8
      %s474 = scalar_lea.vmem %s14, %s473
      %p475 = scmp.lt.s32.totalorder %s27, 1
      %s476 = scalar_select %p475, %s27, 1
      %s477 = smul.addr %s476, 4
      %s478 = smul.addr %s477, 8
      %s479 = scalar_lea.vmem %s0, %s478
      %p480 = scmp.lt.s32.totalorder %s27, 1
      %s481 = scalar_select %p480, %s27, 1
      %s482 = smul.addr %s481, 4
      %s483 = smul.addr %s482, 8
      %s484 = scalar_lea.vmem %s1, %s483
      %p485 = scmp.lt.s32.totalorder %s27, 1
      %s486 = scalar_select %p485, %s27, 1
      %s487 = smul.addr %s486, 8
      %s488 = smul.addr %s487, 8
      %s489 = scalar_lea.vmem %s14, %s488
      %v490 = vld [vmem:[%s479] sm:$0xff]
      %v491 = vld [vmem:[%s479 + $0x8] sm:$0xff]
      %v492 = vld [vmem:[%s479 + $0x10] sm:$0xff]
      %v493 = vld [vmem:[%s479 + $0x18] sm:$0xff]
      %v494 = vld [vmem:[%s484] sm:$0xff]
      %v495 = vld [vmem:[%s484 + $0x8] sm:$0xff]
      %v496 = vld [vmem:[%s484 + $0x10] sm:$0xff]
      %v497 = vld [vmem:[%s484 + $0x18] sm:$0xff]
      %v498 = vld [vmem:[%s8] sm:$0xff]
      %v499 = vld [vmem:[%s8 + $0x8] sm:$0xff]
      %v500 = vld [vmem:[%s8 + $0x10] sm:$0xff]
      %v501 = vld [vmem:[%s8 + $0x18] sm:$0xff]
      %v502 = vld [vmem:[%s9] sm:$0xff]
      %v503 = vld [vmem:[%s9 + $0x8] sm:$0xff]
      %v504 = vld [vmem:[%s9 + $0x10] sm:$0xff]
      %v505 = vld [vmem:[%s9 + $0x18] sm:$0xff]
      %vm506 = vcmask 130048
      %v508 = vsel %vm506, %v502, 0
      %v511 = vsel %vm506, %v503, 0
      %v514 = vsel %vm506, %v504, 0
      %v517 = vsel %vm506, %v505, 0
      %519 = vmatprep.subr.mxu0 0.0
      %520 = vmatpush1.msra.mxu0 0.0
      %521 = vmatprep.subr.mxu0 0.0
      %522 = vmatpush1.msra.mxu0 0.0
      %523 = vmatprep.subr.mxu0 0.0
      %524 = vmatpush1.msra.mxu0 0.0
      %525 = vmatprep.subr.mxu0 0.0
      %526 = vmatpush1.msra.mxu0 0.0
      %527 = vmatprep.subr.mxu0 0.0
      %528 = vmatpush1.msra.mxu0 0.0
      %529 = vmatprep.subr.mxu0 0.0
      %530 = vmatpush1.msra.mxu0 0.0
      %531 = vmatprep.subr.mxu0 0.0
      %532 = vmatpush1.msra.mxu0 0.0
      %533 = vmatprep.subr.mxu0 0.0
      %534 = vmatpush1.msra.mxu0 0.0
      %535 = vmatprep.subr.mxu0 0.0
      %536 = vmatpush1.msra.mxu0 0.0
      %537 = vmatprep.subr.mxu0 0.0
      %538 = vmatpush1.msra.mxu0 0.0
      %539 = vmatprep.subr.mxu0 0.0
      %540 = vmatpush1.msra.mxu0 0.0
      %541 = vmatprep.subr.mxu0 0.0
      %542 = vmatpush1.msra.mxu0 0.0
      %543 = vmatprep.subr.mxu0 0.0
      %544 = vmatpush1.msra.mxu0 0.0
      %545 = vmatprep.subr.mxu0 0.0
      %546 = vmatpush1.msra.mxu0 0.0
      %547 = vmatprep.subr.mxu0 %v497
      %548 = vmatpush1.msra.mxu0 %v496
      %549 = vmatprep.subr.mxu0 %v495
      %550 = vmatpush1.msra.mxu0 %v494
      %551 = vmatprep.subr.mxu0 0.0
      %552 = vmatpush2.msra.mxu0 0.0
      %553 = vmatprep.subr.mxu0 0.0
      %554 = vmatpush2.msra.mxu0 0.0
      %555 = vmatprep.subr.mxu0 0.0
      %556 = vmatpush2.msra.mxu0 0.0
      %557 = vmatprep.subr.mxu0 0.0
      %558 = vmatpush2.msra.mxu0 0.0
      %559 = vmatprep.subr.mxu0 0.0
      %560 = vmatpush2.msra.mxu0 0.0
      %561 = vmatprep.subr.mxu0 0.0
      %562 = vmatpush2.msra.mxu0 0.0
      %563 = vmatprep.subr.mxu0 0.0
      %564 = vmatpush2.msra.mxu0 0.0
      %565 = vmatprep.subr.mxu0 0.0
      %566 = vmatpush2.msra.mxu0 0.0
      %567 = vmatprep.subr.mxu0 0.0
      %568 = vmatpush2.msra.mxu0 0.0
      %569 = vmatprep.subr.mxu0 0.0
      %570 = vmatpush2.msra.mxu0 0.0
      %571 = vmatprep.subr.mxu0 0.0
      %572 = vmatpush2.msra.mxu0 0.0
      %573 = vmatprep.subr.mxu0 0.0
      %574 = vmatpush2.msra.mxu0 0.0
      %575 = vmatprep.subr.mxu0 0.0
      %576 = vmatpush2.msra.mxu0 0.0
      %577 = vmatprep.subr.mxu0 0.0
      %578 = vmatpush2.msra.mxu0 0.0
      %579 = vmatprep.subr.mxu0 0.0
      %580 = vmatpush2.msra.mxu0 0.0
      %581 = vmatprep.subr.mxu0 0.0
      %582 = vmatpush2.msra.mxu0 0.0
      %583 = vmatprep.mubr.f32.mxu0 0.0
      %584 = vmatmul.mubr.f32.gmra.mxu0 %v508
      %v585 = vpop.f32.mrf.mxu0
      %v586 = vadd.f32 0.0, %v585
      %v587 = vpop.f32.mrf.mxu0
      %v588 = vadd.f32 0.0, %v587
      %589 = vmatprep.mubr.f32.mxu0 0.0
      %590 = vmatmul.mubr.f32.gmra.mxu0 %v511
      %v591 = vpop.f32.mrf.mxu0
      %v592 = vadd.f32 0.0, %v591
      %v593 = vpop.f32.mrf.mxu0
      %v594 = vadd.f32 0.0, %v593
      %595 = vmatprep.mubr.f32.mxu0 0.0
      %596 = vmatmul.mubr.f32.gmra.mxu0 %v514
      %v597 = vpop.f32.mrf.mxu0
      %v598 = vadd.f32 0.0, %v597
      %v599 = vpop.f32.mrf.mxu0
      %v600 = vadd.f32 0.0, %v599
      %601 = vmatprep.mubr.f32.mxu0 0.0
      %602 = vmatmul.mubr.f32.gmra.mxu0 %v517
      %v603 = vpop.f32.mrf.mxu0
      %v604 = vadd.f32 0.0, %v603
      %v605 = vpop.f32.mrf.mxu0
      %v606 = vadd.f32 0.0, %v605
      %607 = vdwg.mxu0
      %v609 = vsel %vm506, %v498, 0
      %v612 = vsel %vm506, %v499, 0
      %v615 = vsel %vm506, %v500, 0
      %v618 = vsel %vm506, %v501, 0
      %620 = vmatprep.subr.mxu0 0.0
      %621 = vmatpush1.msra.mxu0 0.0
      %622 = vmatprep.subr.mxu0 0.0
      %623 = vmatpush1.msra.mxu0 0.0
      %624 = vmatprep.subr.mxu0 0.0
      %625 = vmatpush1.msra.mxu0 0.0
      %626 = vmatprep.subr.mxu0 0.0
      %627 = vmatpush1.msra.mxu0 0.0
      %628 = vmatprep.subr.mxu0 0.0
      %629 = vmatpush1.msra.mxu0 0.0
      %630 = vmatprep.subr.mxu0 0.0
      %631 = vmatpush1.msra.mxu0 0.0
      %632 = vmatprep.subr.mxu0 0.0
      %633 = vmatpush1.msra.mxu0 0.0
      %634 = vmatprep.subr.mxu0 0.0
      %635 = vmatpush1.msra.mxu0 0.0
      %636 = vmatprep.subr.mxu0 0.0
      %637 = vmatpush1.msra.mxu0 0.0
      %638 = vmatprep.subr.mxu0 0.0
      %639 = vmatpush1.msra.mxu0 0.0
      %640 = vmatprep.subr.mxu0 0.0
      %641 = vmatpush1.msra.mxu0 0.0
      %642 = vmatprep.subr.mxu0 0.0
      %643 = vmatpush1.msra.mxu0 0.0
      %644 = vmatprep.subr.mxu0 0.0
      %645 = vmatpush1.msra.mxu0 0.0
      %646 = vmatprep.subr.mxu0 0.0
      %647 = vmatpush1.msra.mxu0 0.0
      %648 = vmatprep.subr.mxu0 %v493
      %649 = vmatpush1.msra.mxu0 %v492
      %650 = vmatprep.subr.mxu0 %v491
      %651 = vmatpush1.msra.mxu0 %v490
      %652 = vmatprep.subr.mxu0 0.0
      %653 = vmatpush2.msra.mxu0 0.0
      %654 = vmatprep.subr.mxu0 0.0
      %655 = vmatpush2.msra.mxu0 0.0
      %656 = vmatprep.subr.mxu0 0.0
      %657 = vmatpush2.msra.mxu0 0.0
      %658 = vmatprep.subr.mxu0 0.0
      %659 = vmatpush2.msra.mxu0 0.0
      %660 = vmatprep.subr.mxu0 0.0
      %661 = vmatpush2.msra.mxu0 0.0
      %662 = vmatprep.subr.mxu0 0.0
      %663 = vmatpush2.msra.mxu0 0.0
      %664 = vmatprep.subr.mxu0 0.0
      %665 = vmatpush2.msra.mxu0 0.0
      %666 = vmatprep.subr.mxu0 0.0
      %667 = vmatpush2.msra.mxu0 0.0
      %668 = vmatprep.subr.mxu0 0.0
      %669 = vmatpush2.msra.mxu0 0.0
      %670 = vmatprep.subr.mxu0 0.0
      %671 = vmatpush2.msra.mxu0 0.0
      %672 = vmatprep.subr.mxu0 0.0
      %673 = vmatpush2.msra.mxu0 0.0
      %674 = vmatprep.subr.mxu0 0.0
      %675 = vmatpush2.msra.mxu0 0.0
      %676 = vmatprep.subr.mxu0 0.0
      %677 = vmatpush2.msra.mxu0 0.0
      %678 = vmatprep.subr.mxu0 0.0
      %679 = vmatpush2.msra.mxu0 0.0
      %680 = vmatprep.subr.mxu0 0.0
      %681 = vmatpush2.msra.mxu0 0.0
      %682 = vmatprep.subr.mxu0 0.0
      %683 = vmatpush2.msra.mxu0 0.0
      %684 = vmatprep.mubr.f32.mxu0 0.0
      %685 = vmatmul.mubr.f32.gmra.mxu0 %v609
      %v686 = vpop.f32.mrf.mxu0
      %v687 = vadd.f32 %v586, %v686
      %v688 = vpop.f32.mrf.mxu0
      %v689 = vadd.f32 %v588, %v688
      %690 = vmatprep.mubr.f32.mxu0 0.0
      %691 = vmatmul.mubr.f32.gmra.mxu0 %v612
      %v692 = vpop.f32.mrf.mxu0
      %v693 = vadd.f32 %v592, %v692
      %v694 = vpop.f32.mrf.mxu0
      %v695 = vadd.f32 %v594, %v694
      %696 = vmatprep.mubr.f32.mxu0 0.0
      %697 = vmatmul.mubr.f32.gmra.mxu0 %v615
      %v698 = vpop.f32.mrf.mxu0
      %v699 = vadd.f32 %v598, %v698
      %v700 = vpop.f32.mrf.mxu0
      %v701 = vadd.f32 %v600, %v700
      %702 = vmatprep.mubr.f32.mxu0 0.0
      %703 = vmatmul.mubr.f32.gmra.mxu0 %v618
      %v704 = vpop.f32.mrf.mxu0
      %v705 = vadd.f32 %v604, %v704
      %v706 = vpop.f32.mrf.mxu0
      %v707 = vadd.f32 %v606, %v706
      %708 = vdwg.mxu0
      %v709 = vld [vmem:[%s10] sm:$0xff]
      %v710 = vld [vmem:[%s10 + $0x8] sm:$0xff]
      %v711 = vld [vmem:[%s10 + $0x10] sm:$0xff]
      %v712 = vld [vmem:[%s10 + $0x18] sm:$0xff]
      %714 = vset.pattern.permute.xlu0 0
      %715 = vperm.xlu0 %714, %v709
      %v716 = vpop.permute.xlu0 %715
      %719 = vset.pattern.permute.xlu0 0
      %720 = vperm.xlu0 %719, %v710
      %v721 = vpop.permute.xlu0 %720
      %724 = vset.pattern.permute.xlu0 0
      %725 = vperm.xlu0 %724, %v711
      %v726 = vpop.permute.xlu0 %725
      %729 = vset.pattern.permute.xlu0 0
      %730 = vperm.xlu0 %729, %v712
      %v731 = vpop.permute.xlu0 %730
      %v733 = vadd.f32 %v687, %v716
      %v734 = vadd.f32 %v689, %v716
      %v735 = vadd.f32 %v693, %v721
      %v736 = vadd.f32 %v695, %v721
      %v737 = vadd.f32 %v699, %v726
      %v738 = vadd.f32 %v701, %v726
      %v739 = vadd.f32 %v705, %v731
      %v740 = vadd.f32 %v707, %v731
      %v741 = vadd.f32 %v490, %v491
      %742 = vadd.xlane.f32.xlu0 %v741
      %v743 = vpop.xlane.xlu0 %742
      %v744 = vadd.f32 %v492, %v493
      %745 = vadd.xlane.f32.xlu0 %v744
      %v746 = vpop.xlane.xlu0 %745
      %v747 = vrcp.pop 256.0
      %v748 = vmul.f32 %v743, %v747
      %v749 = vmul.f32 %v746, %v747
      %v750 = vadd.f32 %v494, %v495
      %751 = vadd.xlane.f32.xlu0 %v750
      %v752 = vpop.xlane.xlu0 %751
      %v753 = vadd.f32 %v496, %v497
      %754 = vadd.xlane.f32.xlu0 %v753
      %v755 = vpop.xlane.xlu0 %754
      %v756 = vmul.f32 %v752, %v747
      %v757 = vmul.f32 %v755, %v747
      %v758 = vmax.f32 %v490, %v491
      %759 = vmax.xlane.f32.xlu0 %v758
      %v760 = vpop.xlane.xlu0 %759
      %v761 = vmax.f32 %v492, %v493
      %762 = vmax.xlane.f32.xlu0 %v761
      %v763 = vpop.xlane.xlu0 %762
      %v764 = vmax.f32 %v494, %v495
      %765 = vmax.xlane.f32.xlu0 %v764
      %v766 = vpop.xlane.xlu0 %765
      %v767 = vmax.f32 %v496, %v497
      %768 = vmax.xlane.f32.xlu0 %v767
      %v769 = vpop.xlane.xlu0 %768
      %vm770 = vcmask 7168
      %v771 = vsel %vm770, %v748, %v756
      %v772 = vsel %vm770, %v749, %v757
      %vm773 = vcmask 15360
      %v774 = vsel %vm773, %v771, %v760
      %v775 = vsel %vm773, %v772, %v763
      %vm776 = vcmask 23552
      %v777 = vsel %vm776, %v774, %v766
      %v778 = vsel %vm776, %v775, %v769
      %v779 = vld [vmem:[%s2] sm:$0x3]
      %v780 = vld [vmem:[%s3] sm:$0x3]
      %782 = vset.pattern.permute.xlu0 0
      %783 = vperm.xlu0 %782, %v780
      %v784 = vpop.permute.xlu0 %783
      %v787 = vsel %vm506, %v779, 0
      %789 = vmatprep.subr.mxu0 0.0
      %790 = vmatpush1.msra.mxu0 0.0
      %791 = vmatprep.subr.mxu0 0.0
      %792 = vmatpush1.msra.mxu0 0.0
      %793 = vmatprep.subr.mxu0 0.0
      %794 = vmatpush1.msra.mxu0 0.0
      %795 = vmatprep.subr.mxu0 0.0
      %796 = vmatpush1.msra.mxu0 0.0
      %797 = vmatprep.subr.mxu0 0.0
      %798 = vmatpush1.msra.mxu0 0.0
      %799 = vmatprep.subr.mxu0 0.0
      %800 = vmatpush1.msra.mxu0 0.0
      %801 = vmatprep.subr.mxu0 0.0
      %802 = vmatpush1.msra.mxu0 0.0
      %803 = vmatprep.subr.mxu0 0.0
      %804 = vmatpush1.msra.mxu0 0.0
      %805 = vmatprep.subr.mxu0 0.0
      %806 = vmatpush1.msra.mxu0 0.0
      %807 = vmatprep.subr.mxu0 0.0
      %808 = vmatpush1.msra.mxu0 0.0
      %809 = vmatprep.subr.mxu0 0.0
      %810 = vmatpush1.msra.mxu0 0.0
      %811 = vmatprep.subr.mxu0 0.0
      %812 = vmatpush1.msra.mxu0 0.0
      %813 = vmatprep.subr.mxu0 0.0
      %814 = vmatpush1.msra.mxu0 0.0
      %815 = vmatprep.subr.mxu0 0.0
      %816 = vmatpush1.msra.mxu0 0.0
      %817 = vmatprep.subr.mxu0 0.0
      %818 = vmatpush1.msra.mxu0 %v778
      %819 = vmatprep.subr.mxu0 0.0
      %820 = vmatpush1.msra.mxu0 %v777
      %821 = vmatprep.subr.mxu0 0.0
      %822 = vmatpush2.msra.mxu0 0.0
      %823 = vmatprep.subr.mxu0 0.0
      %824 = vmatpush2.msra.mxu0 0.0
      %825 = vmatprep.subr.mxu0 0.0
      %826 = vmatpush2.msra.mxu0 0.0
      %827 = vmatprep.subr.mxu0 0.0
      %828 = vmatpush2.msra.mxu0 0.0
      %829 = vmatprep.subr.mxu0 0.0
      %830 = vmatpush2.msra.mxu0 0.0
      %831 = vmatprep.subr.mxu0 0.0
      %832 = vmatpush2.msra.mxu0 0.0
      %833 = vmatprep.subr.mxu0 0.0
      %834 = vmatpush2.msra.mxu0 0.0
      %835 = vmatprep.subr.mxu0 0.0
      %836 = vmatpush2.msra.mxu0 0.0
      %837 = vmatprep.subr.mxu0 0.0
      %838 = vmatpush2.msra.mxu0 0.0
      %839 = vmatprep.subr.mxu0 0.0
      %840 = vmatpush2.msra.mxu0 0.0
      %841 = vmatprep.subr.mxu0 0.0
      %842 = vmatpush2.msra.mxu0 0.0
      %843 = vmatprep.subr.mxu0 0.0
      %844 = vmatpush2.msra.mxu0 0.0
      %845 = vmatprep.subr.mxu0 0.0
      %846 = vmatpush2.msra.mxu0 0.0
      %847 = vmatprep.subr.mxu0 0.0
      %848 = vmatpush2.msra.mxu0 0.0
      %849 = vmatprep.subr.mxu0 0.0
      %850 = vmatpush2.msra.mxu0 0.0
      %851 = vmatprep.subr.mxu0 0.0
      %852 = vmatpush2.msra.mxu0 0.0
      %853 = vmatprep.mubr.f32.mxu0 0.0
      %854 = vmatmul.mubr.f32.gmra.mxu0 %v787
      %v855 = vpop.f32.mrf.mxu0
      %v856 = vadd.f32 %v784, %v855
      %v857 = vpop.f32.mrf.mxu0
      %858 = vdwg.mxu0
      %v859 = vmax.f32 %v856, 0.0
      %v860 = vld [vmem:[%s4] sm:$0xff]
      %v861 = vld [vmem:[%s4 + $0x8] sm:$0xff]
      %v862 = vld [vmem:[%s5] sm:$0xff]
      %v863 = vld [vmem:[%s5 + $0x8] sm:$0xff]
      %865 = vset.pattern.permute.xlu0 0
      %866 = vperm.xlu0 %865, %v862
      %v867 = vpop.permute.xlu0 %866
      %870 = vset.pattern.permute.xlu0 0
      %871 = vperm.xlu0 %870, %v863
      %v872 = vpop.permute.xlu0 %871
      %v875 = vsel %vm773, %v860, 0
      %v878 = vsel %vm773, %v861, 0
      %vm880 = vcmask 1041408
      %v882 = vsel %vm880, %v859, 0
      %884 = vmatprep.subr.mxu0 0.0
      %885 = vmatpush1.msra.mxu0 0.0
      %886 = vmatprep.subr.mxu0 0.0
      %887 = vmatpush1.msra.mxu0 0.0
      %888 = vmatprep.subr.mxu0 0.0
      %889 = vmatpush1.msra.mxu0 0.0
      %890 = vmatprep.subr.mxu0 0.0
      %891 = vmatpush1.msra.mxu0 0.0
      %892 = vmatprep.subr.mxu0 0.0
      %893 = vmatpush1.msra.mxu0 0.0
      %894 = vmatprep.subr.mxu0 0.0
      %895 = vmatpush1.msra.mxu0 0.0
      %896 = vmatprep.subr.mxu0 0.0
      %897 = vmatpush1.msra.mxu0 0.0
      %898 = vmatprep.subr.mxu0 0.0
      %899 = vmatpush1.msra.mxu0 0.0
      %900 = vmatprep.subr.mxu0 0.0
      %901 = vmatpush1.msra.mxu0 0.0
      %902 = vmatprep.subr.mxu0 0.0
      %903 = vmatpush1.msra.mxu0 0.0
      %904 = vmatprep.subr.mxu0 0.0
      %905 = vmatpush1.msra.mxu0 0.0
      %906 = vmatprep.subr.mxu0 0.0
      %907 = vmatpush1.msra.mxu0 0.0
      %908 = vmatprep.subr.mxu0 0.0
      %909 = vmatpush1.msra.mxu0 0.0
      %910 = vmatprep.subr.mxu0 0.0
      %911 = vmatpush1.msra.mxu0 0.0
      %912 = vmatprep.subr.mxu0 0.0
      %913 = vmatpush1.msra.mxu0 0.0
      %914 = vmatprep.subr.mxu0 0.0
      %915 = vmatpush1.msra.mxu0 %v882
      %916 = vmatprep.subr.mxu0 0.0
      %917 = vmatpush2.msra.mxu0 0.0
      %918 = vmatprep.subr.mxu0 0.0
      %919 = vmatpush2.msra.mxu0 0.0
      %920 = vmatprep.subr.mxu0 0.0
      %921 = vmatpush2.msra.mxu0 0.0
      %922 = vmatprep.subr.mxu0 0.0
      %923 = vmatpush2.msra.mxu0 0.0
      %924 = vmatprep.subr.mxu0 0.0
      %925 = vmatpush2.msra.mxu0 0.0
      %926 = vmatprep.subr.mxu0 0.0
      %927 = vmatpush2.msra.mxu0 0.0
      %928 = vmatprep.subr.mxu0 0.0
      %929 = vmatpush2.msra.mxu0 0.0
      %930 = vmatprep.subr.mxu0 0.0
      %931 = vmatpush2.msra.mxu0 0.0
      %932 = vmatprep.subr.mxu0 0.0
      %933 = vmatpush2.msra.mxu0 0.0
      %934 = vmatprep.subr.mxu0 0.0
      %935 = vmatpush2.msra.mxu0 0.0
      %936 = vmatprep.subr.mxu0 0.0
      %937 = vmatpush2.msra.mxu0 0.0
      %938 = vmatprep.subr.mxu0 0.0
      %939 = vmatpush2.msra.mxu0 0.0
      %940 = vmatprep.subr.mxu0 0.0
      %941 = vmatpush2.msra.mxu0 0.0
      %942 = vmatprep.subr.mxu0 0.0
      %943 = vmatpush2.msra.mxu0 0.0
      %944 = vmatprep.subr.mxu0 0.0
      %945 = vmatpush2.msra.mxu0 0.0
      %946 = vmatprep.subr.mxu0 0.0
      %947 = vmatpush2.msra.mxu0 0.0
      %948 = vmatprep.mubr.f32.mxu0 0.0
      %949 = vmatmul.mubr.f32.gmra.mxu0 %v875
      %v950 = vpop.f32.mrf.mxu0
      %v951 = vadd.f32 %v867, %v950
      %v952 = vpop.f32.mrf.mxu0
      %953 = vmatprep.mubr.f32.mxu0 0.0
      %954 = vmatmul.mubr.f32.gmra.mxu0 %v878
      %v955 = vpop.f32.mrf.mxu0
      %v956 = vadd.f32 %v872, %v955
      %v957 = vpop.f32.mrf.mxu0
      %958 = vdwg.mxu0
      %961 = vrot.lane.b32.xlu0 %v951, 126
      %v962 = vpop.permute.xlu0 %961
      %963 = vrot.lane.b32.xlu0 %v956, 126
      %v964 = vpop.permute.xlu0 %963
      %v967 = vadd.f32 %v951, %v962
      %v968 = vadd.f32 %v956, %v964
      %v969 = vxor.u32 %v967, 2147483648
      %v970 = vxor.u32 %v968, 2147483648
      %v971 = vmul.f32 %v969, 1.442695
      %v972 = vpow.pop %v971
      %v973 = vmul.f32 %v970, 1.442695
      %v974 = vpow.pop %v973
      %v975 = vadd.f32 %v972, 1.0
      %v976 = vadd.f32 %v974, 1.0
      %v977 = vrcp.pop %v975
      %v978 = vmul.f32 1.0, %v977
      %v979 = vrcp.pop %v976
      %v980 = vmul.f32 1.0, %v979
      %982 = vset.pattern.permute.xlu0 0
      %983 = vperm.xlu0 %982, %v978
      %v984 = vpop.permute.xlu0 %983
      %987 = vset.pattern.permute.xlu0 0
      %988 = vperm.xlu0 %987, %v980
      %v989 = vpop.permute.xlu0 %988
      %v991 = vmul.f32 %v490, %v984
      %v992 = vmul.f32 %v491, %v984
      %v993 = vmul.f32 %v492, %v989
      %v994 = vmul.f32 %v493, %v989
      %995 = vset.pattern.permute.xlu0 1
      %996 = vperm.xlu0 %995, %v978
      %v997 = vpop.permute.xlu0 %996
      %999 = vset.pattern.permute.xlu0 1
      %1000 = vperm.xlu0 %999, %v980
      %v1001 = vpop.permute.xlu0 %1000
      %v1003 = vmul.f32 %v494, %v997
      %v1004 = vmul.f32 %v495, %v997
      %v1005 = vmul.f32 %v496, %v1001
      %v1006 = vmul.f32 %v497, %v1001
      %v1007 = vadd.f32 %v991, %v993
      %v1008 = vrot.slane %v1007, 4
      %v1009 = vadd.f32 %v1007, %v1008
      %v1010 = vrot.slane %v1009, 2
      %v1011 = vadd.f32 %v1009, %v1010
      %v1012 = vrot.slane %v1011, 1
      %v1013 = vadd.f32 %v1011, %v1012
      %v1014 = vadd.f32 %v992, %v994
      %v1015 = vrot.slane %v1014, 4
      %v1016 = vadd.f32 %v1014, %v1015
      %v1017 = vrot.slane %v1016, 2
      %v1018 = vadd.f32 %v1016, %v1017
      %v1019 = vrot.slane %v1018, 1
      %v1020 = vadd.f32 %v1018, %v1019
      %v1021 = vrcp.pop 16.0
      %v1022 = vmul.f32 %v1013, %v1021
      %v1023 = vmul.f32 %v1020, %v1021
      %v1024 = vmax.f32 %v991, %v993
      %v1025 = vrot.slane %v1024, 4
      %v1026 = vmax.f32 %v1024, %v1025
      %v1027 = vrot.slane %v1026, 2
      %v1028 = vmax.f32 %v1026, %v1027
      %v1029 = vrot.slane %v1028, 1
      %v1030 = vmax.f32 %v1028, %v1029
      %v1031 = vmax.f32 %v992, %v994
      %v1032 = vrot.slane %v1031, 4
      %v1033 = vmax.f32 %v1031, %v1032
      %v1034 = vrot.slane %v1033, 2
      %v1035 = vmax.f32 %v1033, %v1034
      %v1036 = vrot.slane %v1035, 1
      %v1037 = vmax.f32 %v1035, %v1036
      %v1038 = vadd.f32 %v1003, %v1005
      %v1039 = vrot.slane %v1038, 4
      %v1040 = vadd.f32 %v1038, %v1039
      %v1041 = vrot.slane %v1040, 2
      %v1042 = vadd.f32 %v1040, %v1041
      %v1043 = vrot.slane %v1042, 1
      %v1044 = vadd.f32 %v1042, %v1043
      %v1045 = vadd.f32 %v1004, %v1006
      %v1046 = vrot.slane %v1045, 4
      %v1047 = vadd.f32 %v1045, %v1046
      %v1048 = vrot.slane %v1047, 2
      %v1049 = vadd.f32 %v1047, %v1048
      %v1050 = vrot.slane %v1049, 1
      %v1051 = vadd.f32 %v1049, %v1050
      %v1052 = vmul.f32 %v1044, %v1021
      %v1053 = vmul.f32 %v1051, %v1021
      %v1054 = vmax.f32 %v1003, %v1005
      %v1055 = vrot.slane %v1054, 4
      %v1056 = vmax.f32 %v1054, %v1055
      %v1057 = vrot.slane %v1056, 2
      %v1058 = vmax.f32 %v1056, %v1057
      %v1059 = vrot.slane %v1058, 1
      %v1060 = vmax.f32 %v1058, %v1059
      %v1061 = vmax.f32 %v1004, %v1006
      %v1062 = vrot.slane %v1061, 4
      %v1063 = vmax.f32 %v1061, %v1062
      %v1064 = vrot.slane %v1063, 2
      %v1065 = vmax.f32 %v1063, %v1064
      %v1066 = vrot.slane %v1065, 1
      %v1067 = vmax.f32 %v1065, %v1066
      %v1072 = vrot.slane %v1052, 7
      %v1073 = vrot.slane %v1053, 7
      %v1074 = vrot.slane %v1060, 7
      %v1075 = vrot.slane %v1067, 7
      %vm1080 = vcmask 1040384
      %v1081 = vsel %vm1080, %v1022, %v1072
      %v1082 = vsel %vm1080, %v1023, %v1073
      %v1083 = vsel %vm1080, %v1030, %v1074
      %v1084 = vsel %vm1080, %v1037, %v1075
      %v1085 = vld [vmem:[%s6] sm:$0xff]
      %v1086 = vld [vmem:[%s6 + $0x8] sm:$0xff]
      %v1087 = vld [vmem:[%s6 + $0x10] sm:$0xff]
      %v1088 = vld [vmem:[%s6 + $0x18] sm:$0xff]
      %v1089 = vld [vmem:[%s6 + $0x20] sm:$0xff]
      %v1090 = vld [vmem:[%s6 + $0x28] sm:$0xff]
      %v1091 = vld [vmem:[%s6 + $0x30] sm:$0xff]
      %v1092 = vld [vmem:[%s6 + $0x38] sm:$0xff]
      %v1093 = vld [vmem:[%s6 + $0x40] sm:$0xff]
      %v1094 = vld [vmem:[%s6 + $0x48] sm:$0xff]
      %v1095 = vld [vmem:[%s6 + $0x50] sm:$0xff]
      %v1096 = vld [vmem:[%s6 + $0x58] sm:$0xff]
      %v1097 = vld [vmem:[%s6 + $0x60] sm:$0xff]
      %v1098 = vld [vmem:[%s6 + $0x68] sm:$0xff]
      %v1099 = vld [vmem:[%s6 + $0x70] sm:$0xff]
      %v1100 = vld [vmem:[%s6 + $0x78] sm:$0xff]
      %v1101 = vld [vmem:[%s6 + $0x80] sm:$0xff]
      %v1102 = vld [vmem:[%s6 + $0x88] sm:$0xff]
      %v1103 = vld [vmem:[%s6 + $0x90] sm:$0xff]
      %v1104 = vld [vmem:[%s6 + $0x98] sm:$0xff]
      %v1105 = vld [vmem:[%s6 + $0xa0] sm:$0xff]
      %v1106 = vld [vmem:[%s6 + $0xa8] sm:$0xff]
      %v1107 = vld [vmem:[%s6 + $0xb0] sm:$0xff]
      %v1108 = vld [vmem:[%s6 + $0xb8] sm:$0xff]
      %v1109 = vld [vmem:[%s6 + $0xc0] sm:$0xff]
      %v1110 = vld [vmem:[%s6 + $0xc8] sm:$0xff]
      %v1111 = vld [vmem:[%s6 + $0xd0] sm:$0xff]
      %v1112 = vld [vmem:[%s6 + $0xd8] sm:$0xff]
      %v1113 = vld [vmem:[%s6 + $0xe0] sm:$0xff]
      %v1114 = vld [vmem:[%s6 + $0xe8] sm:$0xff]
      %v1115 = vld [vmem:[%s6 + $0xf0] sm:$0xff]
      %v1116 = vld [vmem:[%s6 + $0xf8] sm:$0xff]
      %v1117 = vld [vmem:[%s6 + $0x100] sm:$0xff]
      %v1118 = vld [vmem:[%s6 + $0x108] sm:$0xff]
      %v1119 = vld [vmem:[%s6 + $0x110] sm:$0xff]
      %v1120 = vld [vmem:[%s6 + $0x118] sm:$0xff]
      %v1121 = vld [vmem:[%s6 + $0x120] sm:$0xff]
      %v1122 = vld [vmem:[%s6 + $0x128] sm:$0xff]
      %v1123 = vld [vmem:[%s6 + $0x130] sm:$0xff]
      %v1124 = vld [vmem:[%s6 + $0x138] sm:$0xff]
      %v1125 = vld [vmem:[%s6 + $0x140] sm:$0xff]
      %v1126 = vld [vmem:[%s6 + $0x148] sm:$0xff]
      %v1127 = vld [vmem:[%s6 + $0x150] sm:$0xff]
      %v1128 = vld [vmem:[%s6 + $0x158] sm:$0xff]
      %v1129 = vld [vmem:[%s6 + $0x160] sm:$0xff]
      %v1130 = vld [vmem:[%s6 + $0x168] sm:$0xff]
      %v1131 = vld [vmem:[%s6 + $0x170] sm:$0xff]
      %v1132 = vld [vmem:[%s6 + $0x178] sm:$0xff]
      %v1133 = vld [vmem:[%s6 + $0x180] sm:$0xff]
      %v1134 = vld [vmem:[%s6 + $0x188] sm:$0xff]
      %v1135 = vld [vmem:[%s6 + $0x190] sm:$0xff]
      %v1136 = vld [vmem:[%s6 + $0x198] sm:$0xff]
      %v1137 = vld [vmem:[%s6 + $0x1a0] sm:$0xff]
      %v1138 = vld [vmem:[%s6 + $0x1a8] sm:$0xff]
      %v1139 = vld [vmem:[%s6 + $0x1b0] sm:$0xff]
      %v1140 = vld [vmem:[%s6 + $0x1b8] sm:$0xff]
      %v1141 = vld [vmem:[%s6 + $0x1c0] sm:$0xff]
      %v1142 = vld [vmem:[%s6 + $0x1c8] sm:$0xff]
      %v1143 = vld [vmem:[%s6 + $0x1d0] sm:$0xff]
      %v1144 = vld [vmem:[%s6 + $0x1d8] sm:$0xff]
      %v1145 = vld [vmem:[%s6 + $0x1e0] sm:$0xff]
      %v1146 = vld [vmem:[%s6 + $0x1e8] sm:$0xff]
      %v1147 = vld [vmem:[%s6 + $0x1f0] sm:$0xff]
      %v1148 = vld [vmem:[%s6 + $0x1f8] sm:$0xff]
      %v1149 = vld [vmem:[%s6 + $0x200] sm:$0xff]
      %v1150 = vld [vmem:[%s6 + $0x208] sm:$0xff]
      %v1151 = vld [vmem:[%s6 + $0x210] sm:$0xff]
      %v1152 = vld [vmem:[%s6 + $0x218] sm:$0xff]
      %v1153 = vld [vmem:[%s6 + $0x220] sm:$0xff]
      %v1154 = vld [vmem:[%s6 + $0x228] sm:$0xff]
      %v1155 = vld [vmem:[%s6 + $0x230] sm:$0xff]
      %v1156 = vld [vmem:[%s6 + $0x238] sm:$0xff]
      %v1157 = vld [vmem:[%s6 + $0x240] sm:$0xff]
      %v1158 = vld [vmem:[%s6 + $0x248] sm:$0xff]
      %v1159 = vld [vmem:[%s6 + $0x250] sm:$0xff]
      %v1160 = vld [vmem:[%s6 + $0x258] sm:$0xff]
      %v1161 = vld [vmem:[%s6 + $0x260] sm:$0xff]
      %v1162 = vld [vmem:[%s6 + $0x268] sm:$0xff]
      %v1163 = vld [vmem:[%s6 + $0x270] sm:$0xff]
      %v1164 = vld [vmem:[%s6 + $0x278] sm:$0xff]
      %v1165 = vld [vmem:[%s6 + $0x280] sm:$0xff]
      %v1166 = vld [vmem:[%s6 + $0x288] sm:$0xff]
      %v1167 = vld [vmem:[%s6 + $0x290] sm:$0xff]
      %v1168 = vld [vmem:[%s6 + $0x298] sm:$0xff]
      %v1169 = vld [vmem:[%s6 + $0x2a0] sm:$0xff]
      %v1170 = vld [vmem:[%s6 + $0x2a8] sm:$0xff]
      %v1171 = vld [vmem:[%s6 + $0x2b0] sm:$0xff]
      %v1172 = vld [vmem:[%s6 + $0x2b8] sm:$0xff]
      %v1173 = vld [vmem:[%s6 + $0x2c0] sm:$0xff]
      %v1174 = vld [vmem:[%s6 + $0x2c8] sm:$0xff]
      %v1175 = vld [vmem:[%s6 + $0x2d0] sm:$0xff]
      %v1176 = vld [vmem:[%s6 + $0x2d8] sm:$0xff]
      %v1177 = vld [vmem:[%s6 + $0x2e0] sm:$0xff]
      %v1178 = vld [vmem:[%s6 + $0x2e8] sm:$0xff]
      %v1179 = vld [vmem:[%s6 + $0x2f0] sm:$0xff]
      %v1180 = vld [vmem:[%s6 + $0x2f8] sm:$0xff]
      %v1181 = vld [vmem:[%s6 + $0x300] sm:$0xff]
      %v1182 = vld [vmem:[%s6 + $0x308] sm:$0xff]
      %v1183 = vld [vmem:[%s6 + $0x310] sm:$0xff]
      %v1184 = vld [vmem:[%s6 + $0x318] sm:$0xff]
      %v1185 = vld [vmem:[%s6 + $0x320] sm:$0xff]
      %v1186 = vld [vmem:[%s6 + $0x328] sm:$0xff]
      %v1187 = vld [vmem:[%s6 + $0x330] sm:$0xff]
      %v1188 = vld [vmem:[%s6 + $0x338] sm:$0xff]
      %v1189 = vld [vmem:[%s6 + $0x340] sm:$0xff]
      %v1190 = vld [vmem:[%s6 + $0x348] sm:$0xff]
      %v1191 = vld [vmem:[%s6 + $0x350] sm:$0xff]
      %v1192 = vld [vmem:[%s6 + $0x358] sm:$0xff]
      %v1193 = vld [vmem:[%s6 + $0x360] sm:$0xff]
      %v1194 = vld [vmem:[%s6 + $0x368] sm:$0xff]
      %v1195 = vld [vmem:[%s6 + $0x370] sm:$0xff]
      %v1196 = vld [vmem:[%s6 + $0x378] sm:$0xff]
      %v1197 = vld [vmem:[%s6 + $0x380] sm:$0xff]
      %v1198 = vld [vmem:[%s6 + $0x388] sm:$0xff]
      %v1199 = vld [vmem:[%s6 + $0x390] sm:$0xff]
      %v1200 = vld [vmem:[%s6 + $0x398] sm:$0xff]
      %v1201 = vld [vmem:[%s6 + $0x3a0] sm:$0xff]
      %v1202 = vld [vmem:[%s6 + $0x3a8] sm:$0xff]
      %v1203 = vld [vmem:[%s6 + $0x3b0] sm:$0xff]
      %v1204 = vld [vmem:[%s6 + $0x3b8] sm:$0xff]
      %v1205 = vld [vmem:[%s6 + $0x3c0] sm:$0xff]
      %v1206 = vld [vmem:[%s6 + $0x3c8] sm:$0xff]
      %v1207 = vld [vmem:[%s6 + $0x3d0] sm:$0xff]
      %v1208 = vld [vmem:[%s6 + $0x3d8] sm:$0xff]
      %v1209 = vld [vmem:[%s6 + $0x3e0] sm:$0xff]
      %v1210 = vld [vmem:[%s6 + $0x3e8] sm:$0xff]
      %v1211 = vld [vmem:[%s6 + $0x3f0] sm:$0xff]
      %v1212 = vld [vmem:[%s6 + $0x3f8] sm:$0xff]
      %v1213 = vld [vmem:[#allocation2] sm:$0x1]
      %v1215 = vlaneseq
      %v1216 = vshrl.u32 %v1215, 7
      %v1217 = vsub.s32 0, %v1216
      %v1218 = vrot.slane %v1213, %v1217
      %1219 = vset.pattern.permute.xlu0 0
      %1220 = vperm.xlu0 %1219, %v1218
      %v1221 = vpop.permute.xlu0 %1220
      %1223 = vmatprep.subr.mxu0 %v1116
      %1224 = vmatpush1.msra.mxu0 %v1115
      %1225 = vmatprep.subr.mxu0 %v1114
      %1226 = vmatpush1.msra.mxu0 %v1113
      %1227 = vmatprep.subr.mxu0 %v1112
      %1228 = vmatpush1.msra.mxu0 %v1111
      %1229 = vmatprep.subr.mxu0 %v1110
      %1230 = vmatpush1.msra.mxu0 %v1109
      %1231 = vmatprep.subr.mxu0 %v1108
      %1232 = vmatpush1.msra.mxu0 %v1107
      %1233 = vmatprep.subr.mxu0 %v1106
      %1234 = vmatpush1.msra.mxu0 %v1105
      %1235 = vmatprep.subr.mxu0 %v1104
      %1236 = vmatpush1.msra.mxu0 %v1103
      %1237 = vmatprep.subr.mxu0 %v1102
      %1238 = vmatpush1.msra.mxu0 %v1101
      %1239 = vmatprep.subr.mxu0 %v1100
      %1240 = vmatpush1.msra.mxu0 %v1099
      %1241 = vmatprep.subr.mxu0 %v1098
      %1242 = vmatpush1.msra.mxu0 %v1097
      %1243 = vmatprep.subr.mxu0 %v1096
      %1244 = vmatpush1.msra.mxu0 %v1095
      %1245 = vmatprep.subr.mxu0 %v1094
      %1246 = vmatpush1.msra.mxu0 %v1093
      %1247 = vmatprep.subr.mxu0 %v1092
      %1248 = vmatpush1.msra.mxu0 %v1091
      %1249 = vmatprep.subr.mxu0 %v1090
      %1250 = vmatpush1.msra.mxu0 %v1089
      %1251 = vmatprep.subr.mxu0 %v1088
      %1252 = vmatpush1.msra.mxu0 %v1087
      %1253 = vmatprep.subr.mxu0 %v1086
      %1254 = vmatpush1.msra.mxu0 %v1085
      %1255 = vmatprep.subr.mxu0 %v1148
      %1256 = vmatpush2.msra.mxu0 %v1147
      %1257 = vmatprep.subr.mxu0 %v1146
      %1258 = vmatpush2.msra.mxu0 %v1145
      %1259 = vmatprep.subr.mxu0 %v1144
      %1260 = vmatpush2.msra.mxu0 %v1143
      %1261 = vmatprep.subr.mxu0 %v1142
      %1262 = vmatpush2.msra.mxu0 %v1141
      %1263 = vmatprep.subr.mxu0 %v1140
      %1264 = vmatpush2.msra.mxu0 %v1139
      %1265 = vmatprep.subr.mxu0 %v1138
      %1266 = vmatpush2.msra.mxu0 %v1137
      %1267 = vmatprep.subr.mxu0 %v1136
      %1268 = vmatpush2.msra.mxu0 %v1135
      %1269 = vmatprep.subr.mxu0 %v1134
      %1270 = vmatpush2.msra.mxu0 %v1133
      %1271 = vmatprep.subr.mxu0 %v1132
      %1272 = vmatpush2.msra.mxu0 %v1131
      %1273 = vmatprep.subr.mxu0 %v1130
      %1274 = vmatpush2.msra.mxu0 %v1129
      %1275 = vmatprep.subr.mxu0 %v1128
      %1276 = vmatpush2.msra.mxu0 %v1127
      %1277 = vmatprep.subr.mxu0 %v1126
      %1278 = vmatpush2.msra.mxu0 %v1125
      %1279 = vmatprep.subr.mxu0 %v1124
      %1280 = vmatpush2.msra.mxu0 %v1123
      %1281 = vmatprep.subr.mxu0 %v1122
      %1282 = vmatpush2.msra.mxu0 %v1121
      %1283 = vmatprep.subr.mxu0 %v1120
      %1284 = vmatpush2.msra.mxu0 %v1119
      %1285 = vmatprep.subr.mxu0 %v1118
      %1286 = vmatpush2.msra.mxu0 %v1117
      %1287 = vmatprep.mubr.f32.mxu0 %v1082
      %1288 = vmatmul.mubr.f32.gmra.mxu0 %v1081
      %v1289 = vpop.f32.mrf.mxu0
      %v1290 = vadd.f32 %v1221, %v1289
      %v1291 = vpop.f32.mrf.mxu0
      %v1292 = vadd.f32 %v1221, %v1291
      %1293 = vdwg.mxu0
      %1294 = vmatprep.subr.mxu0 %v1180
      %1295 = vmatpush1.msra.mxu0 %v1179
      %1296 = vmatprep.subr.mxu0 %v1178
      %1297 = vmatpush1.msra.mxu0 %v1177
      %1298 = vmatprep.subr.mxu0 %v1176
      %1299 = vmatpush1.msra.mxu0 %v1175
      %1300 = vmatprep.subr.mxu0 %v1174
      %1301 = vmatpush1.msra.mxu0 %v1173
      %1302 = vmatprep.subr.mxu0 %v1172
      %1303 = vmatpush1.msra.mxu0 %v1171
      %1304 = vmatprep.subr.mxu0 %v1170
      %1305 = vmatpush1.msra.mxu0 %v1169
      %1306 = vmatprep.subr.mxu0 %v1168
      %1307 = vmatpush1.msra.mxu0 %v1167
      %1308 = vmatprep.subr.mxu0 %v1166
      %1309 = vmatpush1.msra.mxu0 %v1165
      %1310 = vmatprep.subr.mxu0 %v1164
      %1311 = vmatpush1.msra.mxu0 %v1163
      %1312 = vmatprep.subr.mxu0 %v1162
      %1313 = vmatpush1.msra.mxu0 %v1161
      %1314 = vmatprep.subr.mxu0 %v1160
      %1315 = vmatpush1.msra.mxu0 %v1159
      %1316 = vmatprep.subr.mxu0 %v1158
      %1317 = vmatpush1.msra.mxu0 %v1157
      %1318 = vmatprep.subr.mxu0 %v1156
      %1319 = vmatpush1.msra.mxu0 %v1155
      %1320 = vmatprep.subr.mxu0 %v1154
      %1321 = vmatpush1.msra.mxu0 %v1153
      %1322 = vmatprep.subr.mxu0 %v1152
      %1323 = vmatpush1.msra.mxu0 %v1151
      %1324 = vmatprep.subr.mxu0 %v1150
      %1325 = vmatpush1.msra.mxu0 %v1149
      %1326 = vmatprep.subr.mxu0 %v1212
      %1327 = vmatpush2.msra.mxu0 %v1211
      %1328 = vmatprep.subr.mxu0 %v1210
      %1329 = vmatpush2.msra.mxu0 %v1209
      %1330 = vmatprep.subr.mxu0 %v1208
      %1331 = vmatpush2.msra.mxu0 %v1207
      %1332 = vmatprep.subr.mxu0 %v1206
      %1333 = vmatpush2.msra.mxu0 %v1205
      %1334 = vmatprep.subr.mxu0 %v1204
      %1335 = vmatpush2.msra.mxu0 %v1203
      %1336 = vmatprep.subr.mxu0 %v1202
      %1337 = vmatpush2.msra.mxu0 %v1201
      %1338 = vmatprep.subr.mxu0 %v1200
      %1339 = vmatpush2.msra.mxu0 %v1199
      %1340 = vmatprep.subr.mxu0 %v1198
      %1341 = vmatpush2.msra.mxu0 %v1197
      %1342 = vmatprep.subr.mxu0 %v1196
      %1343 = vmatpush2.msra.mxu0 %v1195
      %1344 = vmatprep.subr.mxu0 %v1194
      %1345 = vmatpush2.msra.mxu0 %v1193
      %1346 = vmatprep.subr.mxu0 %v1192
      %1347 = vmatpush2.msra.mxu0 %v1191
      %1348 = vmatprep.subr.mxu0 %v1190
      %1349 = vmatpush2.msra.mxu0 %v1189
      %1350 = vmatprep.subr.mxu0 %v1188
      %1351 = vmatpush2.msra.mxu0 %v1187
      %1352 = vmatprep.subr.mxu0 %v1186
      %1353 = vmatpush2.msra.mxu0 %v1185
      %1354 = vmatprep.subr.mxu0 %v1184
      %1355 = vmatpush2.msra.mxu0 %v1183
      %1356 = vmatprep.subr.mxu0 %v1182
      %1357 = vmatpush2.msra.mxu0 %v1181
      %1358 = vmatprep.mubr.f32.mxu0 %v1084
      %1359 = vmatmul.mubr.f32.gmra.mxu0 %v1083
      %v1360 = vpop.f32.mrf.mxu0
      %v1361 = vadd.f32 %v1290, %v1360
      %v1362 = vpop.f32.mrf.mxu0
      %v1363 = vadd.f32 %v1292, %v1362
      %1364 = vdwg.mxu0
      %v1365 = vxor.u32 %v1361, 2147483648
      %v1366 = vxor.u32 %v1363, 2147483648
      %v1367 = vmul.f32 %v1365, 1.442695
      %v1368 = vpow.pop %v1367
      %v1369 = vmul.f32 %v1366, 1.442695
      %v1370 = vpow.pop %v1369
      %v1371 = vadd.f32 %v1368, 1.0
      %v1372 = vadd.f32 %v1370, 1.0
      %v1373 = vrcp.pop %v1371
      %v1374 = vmul.f32 1.0, %v1373
      %v1375 = vrcp.pop %v1372
      %v1376 = vmul.f32 1.0, %v1375
      %v1377 = vlaneseq
      %v1378 = vshrl.u32 %v1377, 7
      %v1379 = vsub.s32 0, %v1378
      %v1380 = vrot.slane %v1374, %v1379
      %v1381 = vlaneseq
      %v1382 = vshrl.u32 %v1381, 7
      %v1383 = vsub.s32 0, %v1382
      %v1384 = vrot.slane %v1376, %v1383
      %v1385 = vmul.f32 %v991, %v1380
      %v1386 = vmul.f32 %v992, %v1384
      %v1387 = vmul.f32 %v993, %v1380
      %v1388 = vmul.f32 %v994, %v1384
      %v1389 = vlaneseq
      %v1390 = vshrl.u32 %v1389, 7
      %v1391 = vsub.s32 1, %v1390
      %v1392 = vrot.slane %v1374, %v1391
      %v1393 = vlaneseq
      %v1394 = vshrl.u32 %v1393, 7
      %v1395 = vsub.s32 1, %v1394
      %v1396 = vrot.slane %v1376, %v1395
      %v1397 = vmul.f32 %v1003, %v1392
      %v1398 = vmul.f32 %v1004, %v1396
      %v1399 = vmul.f32 %v1005, %v1392
      %v1400 = vmul.f32 %v1006, %v1396
      %v1401 = vld [vmem:[%s11] sm:$0xff]
      %v1402 = vld [vmem:[%s11 + $0x8] sm:$0xff]
      %v1403 = vld [vmem:[%s11 + $0x10] sm:$0xff]
      %v1404 = vld [vmem:[%s11 + $0x18] sm:$0xff]
      %v1405 = vld [vmem:[%s12] sm:$0xff]
      %v1406 = vld [vmem:[%s12 + $0x8] sm:$0xff]
      %v1407 = vld [vmem:[%s12 + $0x10] sm:$0xff]
      %v1408 = vld [vmem:[%s12 + $0x18] sm:$0xff]
      %v1410 = vsel %vm506, %v1405, 0
      %v1413 = vsel %vm506, %v1406, 0
      %v1416 = vsel %vm506, %v1407, 0
      %v1419 = vsel %vm506, %v1408, 0
      %1421 = vmatprep.subr.mxu0 0.0
      %1422 = vmatpush1.msra.mxu0 0.0
      %1423 = vmatprep.subr.mxu0 0.0
      %1424 = vmatpush1.msra.mxu0 0.0
      %1425 = vmatprep.subr.mxu0 0.0
      %1426 = vmatpush1.msra.mxu0 0.0
      %1427 = vmatprep.subr.mxu0 0.0
      %1428 = vmatpush1.msra.mxu0 0.0
      %1429 = vmatprep.subr.mxu0 0.0
      %1430 = vmatpush1.msra.mxu0 0.0
      %1431 = vmatprep.subr.mxu0 0.0
      %1432 = vmatpush1.msra.mxu0 0.0
      %1433 = vmatprep.subr.mxu0 0.0
      %1434 = vmatpush1.msra.mxu0 0.0
      %1435 = vmatprep.subr.mxu0 0.0
      %1436 = vmatpush1.msra.mxu0 0.0
      %1437 = vmatprep.subr.mxu0 0.0
      %1438 = vmatpush1.msra.mxu0 0.0
      %1439 = vmatprep.subr.mxu0 0.0
      %1440 = vmatpush1.msra.mxu0 0.0
      %1441 = vmatprep.subr.mxu0 0.0
      %1442 = vmatpush1.msra.mxu0 0.0
      %1443 = vmatprep.subr.mxu0 0.0
      %1444 = vmatpush1.msra.mxu0 0.0
      %1445 = vmatprep.subr.mxu0 0.0
      %1446 = vmatpush1.msra.mxu0 0.0
      %1447 = vmatprep.subr.mxu0 0.0
      %1448 = vmatpush1.msra.mxu0 0.0
      %1449 = vmatprep.subr.mxu0 %v1400
      %1450 = vmatpush1.msra.mxu0 %v1399
      %1451 = vmatprep.subr.mxu0 %v1398
      %1452 = vmatpush1.msra.mxu0 %v1397
      %1453 = vmatprep.subr.mxu0 0.0
      %1454 = vmatpush2.msra.mxu0 0.0
      %1455 = vmatprep.subr.mxu0 0.0
      %1456 = vmatpush2.msra.mxu0 0.0
      %1457 = vmatprep.subr.mxu0 0.0
      %1458 = vmatpush2.msra.mxu0 0.0
      %1459 = vmatprep.subr.mxu0 0.0
      %1460 = vmatpush2.msra.mxu0 0.0
      %1461 = vmatprep.subr.mxu0 0.0
      %1462 = vmatpush2.msra.mxu0 0.0
      %1463 = vmatprep.subr.mxu0 0.0
      %1464 = vmatpush2.msra.mxu0 0.0
      %1465 = vmatprep.subr.mxu0 0.0
      %1466 = vmatpush2.msra.mxu0 0.0
      %1467 = vmatprep.subr.mxu0 0.0
      %1468 = vmatpush2.msra.mxu0 0.0
      %1469 = vmatprep.subr.mxu0 0.0
      %1470 = vmatpush2.msra.mxu0 0.0
      %1471 = vmatprep.subr.mxu0 0.0
      %1472 = vmatpush2.msra.mxu0 0.0
      %1473 = vmatprep.subr.mxu0 0.0
      %1474 = vmatpush2.msra.mxu0 0.0
      %1475 = vmatprep.subr.mxu0 0.0
      %1476 = vmatpush2.msra.mxu0 0.0
      %1477 = vmatprep.subr.mxu0 0.0
      %1478 = vmatpush2.msra.mxu0 0.0
      %1479 = vmatprep.subr.mxu0 0.0
      %1480 = vmatpush2.msra.mxu0 0.0
      %1481 = vmatprep.subr.mxu0 0.0
      %1482 = vmatpush2.msra.mxu0 0.0
      %1483 = vmatprep.subr.mxu0 0.0
      %1484 = vmatpush2.msra.mxu0 0.0
      %1485 = vmatprep.mubr.f32.mxu0 0.0
      %1486 = vmatmul.mubr.f32.gmra.mxu0 %v1410
      %v1487 = vpop.f32.mrf.mxu0
      %v1488 = vadd.f32 0.0, %v1487
      %v1489 = vpop.f32.mrf.mxu0
      %v1490 = vadd.f32 0.0, %v1489
      %1491 = vmatprep.mubr.f32.mxu0 0.0
      %1492 = vmatmul.mubr.f32.gmra.mxu0 %v1413
      %v1493 = vpop.f32.mrf.mxu0
      %v1494 = vadd.f32 0.0, %v1493
      %v1495 = vpop.f32.mrf.mxu0
      %v1496 = vadd.f32 0.0, %v1495
      %1497 = vmatprep.mubr.f32.mxu0 0.0
      %1498 = vmatmul.mubr.f32.gmra.mxu0 %v1416
      %v1499 = vpop.f32.mrf.mxu0
      %v1500 = vadd.f32 0.0, %v1499
      %v1501 = vpop.f32.mrf.mxu0
      %v1502 = vadd.f32 0.0, %v1501
      %1503 = vmatprep.mubr.f32.mxu0 0.0
      %1504 = vmatmul.mubr.f32.gmra.mxu0 %v1419
      %v1505 = vpop.f32.mrf.mxu0
      %v1506 = vadd.f32 0.0, %v1505
      %v1507 = vpop.f32.mrf.mxu0
      %v1508 = vadd.f32 0.0, %v1507
      %1509 = vdwg.mxu0
      %v1511 = vsel %vm506, %v1401, 0
      %v1514 = vsel %vm506, %v1402, 0
      %v1517 = vsel %vm506, %v1403, 0
      %v1520 = vsel %vm506, %v1404, 0
      %1522 = vmatprep.subr.mxu0 0.0
      %1523 = vmatpush1.msra.mxu0 0.0
      %1524 = vmatprep.subr.mxu0 0.0
      %1525 = vmatpush1.msra.mxu0 0.0
      %1526 = vmatprep.subr.mxu0 0.0
      %1527 = vmatpush1.msra.mxu0 0.0
      %1528 = vmatprep.subr.mxu0 0.0
      %1529 = vmatpush1.msra.mxu0 0.0
      %1530 = vmatprep.subr.mxu0 0.0
      %1531 = vmatpush1.msra.mxu0 0.0
      %1532 = vmatprep.subr.mxu0 0.0
      %1533 = vmatpush1.msra.mxu0 0.0
      %1534 = vmatprep.subr.mxu0 0.0
      %1535 = vmatpush1.msra.mxu0 0.0
      %1536 = vmatprep.subr.mxu0 0.0
      %1537 = vmatpush1.msra.mxu0 0.0
      %1538 = vmatprep.subr.mxu0 0.0
      %1539 = vmatpush1.msra.mxu0 0.0
      %1540 = vmatprep.subr.mxu0 0.0
      %1541 = vmatpush1.msra.mxu0 0.0
      %1542 = vmatprep.subr.mxu0 0.0
      %1543 = vmatpush1.msra.mxu0 0.0
      %1544 = vmatprep.subr.mxu0 0.0
      %1545 = vmatpush1.msra.mxu0 0.0
      %1546 = vmatprep.subr.mxu0 0.0
      %1547 = vmatpush1.msra.mxu0 0.0
      %1548 = vmatprep.subr.mxu0 0.0
      %1549 = vmatpush1.msra.mxu0 0.0
      %1550 = vmatprep.subr.mxu0 %v1388
      %1551 = vmatpush1.msra.mxu0 %v1387
      %1552 = vmatprep.subr.mxu0 %v1386
      %1553 = vmatpush1.msra.mxu0 %v1385
      %1554 = vmatprep.subr.mxu0 0.0
      %1555 = vmatpush2.msra.mxu0 0.0
      %1556 = vmatprep.subr.mxu0 0.0
      %1557 = vmatpush2.msra.mxu0 0.0
      %1558 = vmatprep.subr.mxu0 0.0
      %1559 = vmatpush2.msra.mxu0 0.0
      %1560 = vmatprep.subr.mxu0 0.0
      %1561 = vmatpush2.msra.mxu0 0.0
      %1562 = vmatprep.subr.mxu0 0.0
      %1563 = vmatpush2.msra.mxu0 0.0
      %1564 = vmatprep.subr.mxu0 0.0
      %1565 = vmatpush2.msra.mxu0 0.0
      %1566 = vmatprep.subr.mxu0 0.0
      %1567 = vmatpush2.msra.mxu0 0.0
      %1568 = vmatprep.subr.mxu0 0.0
      %1569 = vmatpush2.msra.mxu0 0.0
      %1570 = vmatprep.subr.mxu0 0.0
      %1571 = vmatpush2.msra.mxu0 0.0
      %1572 = vmatprep.subr.mxu0 0.0
      %1573 = vmatpush2.msra.mxu0 0.0
      %1574 = vmatprep.subr.mxu0 0.0
      %1575 = vmatpush2.msra.mxu0 0.0
      %1576 = vmatprep.subr.mxu0 0.0
      %1577 = vmatpush2.msra.mxu0 0.0
      %1578 = vmatprep.subr.mxu0 0.0
      %1579 = vmatpush2.msra.mxu0 0.0
      %1580 = vmatprep.subr.mxu0 0.0
      %1581 = vmatpush2.msra.mxu0 0.0
      %1582 = vmatprep.subr.mxu0 0.0
      %1583 = vmatpush2.msra.mxu0 0.0
      %1584 = vmatprep.subr.mxu0 0.0
      %1585 = vmatpush2.msra.mxu0 0.0
      %1586 = vmatprep.mubr.f32.mxu0 0.0
      %1587 = vmatmul.mubr.f32.gmra.mxu0 %v1511
      %v1588 = vpop.f32.mrf.mxu0
      %v1589 = vadd.f32 %v1488, %v1588
      %v1590 = vpop.f32.mrf.mxu0
      %v1591 = vadd.f32 %v1490, %v1590
      %1592 = vmatprep.mubr.f32.mxu0 0.0
      %1593 = vmatmul.mubr.f32.gmra.mxu0 %v1514
      %v1594 = vpop.f32.mrf.mxu0
      %v1595 = vadd.f32 %v1494, %v1594
      %v1596 = vpop.f32.mrf.mxu0
      %v1597 = vadd.f32 %v1496, %v1596
      %1598 = vmatprep.mubr.f32.mxu0 0.0
      %1599 = vmatmul.mubr.f32.gmra.mxu0 %v1517
      %v1600 = vpop.f32.mrf.mxu0
      %v1601 = vadd.f32 %v1500, %v1600
      %v1602 = vpop.f32.mrf.mxu0
      %v1603 = vadd.f32 %v1502, %v1602
      %1604 = vmatprep.mubr.f32.mxu0 0.0
      %1605 = vmatmul.mubr.f32.gmra.mxu0 %v1520
      %v1606 = vpop.f32.mrf.mxu0
      %v1607 = vadd.f32 %v1506, %v1606
      %v1608 = vpop.f32.mrf.mxu0
      %v1609 = vadd.f32 %v1508, %v1608
      %1610 = vdwg.mxu0
      %v1611 = vld [vmem:[%s13] sm:$0xff]
      %v1612 = vld [vmem:[%s13 + $0x8] sm:$0xff]
      %v1613 = vld [vmem:[%s13 + $0x10] sm:$0xff]
      %v1614 = vld [vmem:[%s13 + $0x18] sm:$0xff]
      %1616 = vset.pattern.permute.xlu0 0
      %1617 = vperm.xlu0 %1616, %v1611
      %v1618 = vpop.permute.xlu0 %1617
      %1621 = vset.pattern.permute.xlu0 0
      %1622 = vperm.xlu0 %1621, %v1612
      %v1623 = vpop.permute.xlu0 %1622
      %1626 = vset.pattern.permute.xlu0 0
      %1627 = vperm.xlu0 %1626, %v1613
      %v1628 = vpop.permute.xlu0 %1627
      %1631 = vset.pattern.permute.xlu0 0
      %1632 = vperm.xlu0 %1631, %v1614
      %v1633 = vpop.permute.xlu0 %1632
      %v1635 = vadd.f32 %v1589, %v1618
      %v1636 = vadd.f32 %v1591, %v1618
      %v1637 = vadd.f32 %v1595, %v1623
      %v1638 = vadd.f32 %v1597, %v1623
      %v1639 = vadd.f32 %v1601, %v1628
      %v1640 = vadd.f32 %v1603, %v1628
      %v1641 = vadd.f32 %v1607, %v1633
      %v1642 = vadd.f32 %v1609, %v1633
      %v1643 = vmul.f32 %v733, %v1635
      %v1644 = vmul.f32 %v734, %v1636
      %v1645 = vmul.f32 %v735, %v1637
      %v1646 = vmul.f32 %v736, %v1638
      %v1647 = vmul.f32 %v737, %v1639
      %v1648 = vmul.f32 %v738, %v1640
      %v1649 = vmul.f32 %v739, %v1641
      %v1650 = vmul.f32 %v740, %v1642
      %v1651 = vadd.f32 %v1643, %v733
      %v1652 = vadd.f32 %v1644, %v734
      %v1653 = vadd.f32 %v1645, %v735
      %v1654 = vadd.f32 %v1646, %v736
      %v1655 = vadd.f32 %v1647, %v737
      %v1656 = vadd.f32 %v1648, %v738
      %v1657 = vadd.f32 %v1649, %v739
      %v1658 = vadd.f32 %v1650, %v740
      %v1659 = vmax.f32 %v1651, 0.0
      %v1660 = vmax.f32 %v1652, 0.0
      %v1661 = vmax.f32 %v1653, 0.0
      %v1662 = vmax.f32 %v1654, 0.0
      %v1663 = vmax.f32 %v1655, 0.0
      %v1664 = vmax.f32 %v1656, 0.0
      %v1665 = vmax.f32 %v1657, 0.0
      %v1666 = vmax.f32 %v1658, 0.0
      %1667 = vst [vmem:[%s489] sm:$0xff] %v1659
      %1668 = vst [vmem:[%s489 + $0x8] sm:$0xff] %v1660
      %1669 = vst [vmem:[%s489 + $0x10] sm:$0xff] %v1661
      %1670 = vst [vmem:[%s489 + $0x18] sm:$0xff] %v1662
      %1671 = vst [vmem:[%s489 + $0x20] sm:$0xff] %v1663
      %1672 = vst [vmem:[%s489 + $0x28] sm:$0xff] %v1664
      %1673 = vst [vmem:[%s489 + $0x30] sm:$0xff] %v1665
      %1674 = vst [vmem:[%s489 + $0x38] sm:$0xff] %v1666
      %p1675 = scmp.lt.s32.totalorder %s27, 1
      %s1676 = scalar_select %p1675, %s27, 1
      %s1677 = smul.addr %s1676, 8
      %s1678 = smul.addr %s1677, 8
      %s1679 = scalar_lea.vmem %s14, %s1678
      // Predicated region
      $region77: #{tcrpn_siam_forward.1} parent=75 // pred_check
        %p1680 = pneg %p349
      $region78: #{tcrpn_siam_forward.1} parent=75 // pred_check_branch
        %1682 = sbr.rel (%p1680) target = $region80
      $region79: #{tcrpn_siam_forward.1} parent=75 // pred_region
        _
      $region80: #{tcrpn_siam_forward.1} parent=75 // pred_fallthru
        _
    $region76: #{tcrpn_siam_forward.1} parent=5 // pred_fallthru
      _
    %p1683 = scmp.le.s32.totalorder 2, %s22
    // Predicated region
    $region81: #{tcrpn_siam_forward.1} parent=5 // pred_check
      %p1684 = pneg %p1683
    $region82: #{tcrpn_siam_forward.1} parent=5 // pred_check_branch
      %1686 = sbr.rel (%p1684) target = $region84
    $region83: #{tcrpn_siam_forward.1} parent=5 // pred_region
      %s1687 = ssub.s32 %s22, 2
      // Predicated region
      $region85: #{tcrpn_siam_forward.1} parent=83 // pred_check
        %p1688 = pneg %p355
      $region86: #{tcrpn_siam_forward.1} parent=83 // pred_check_branch
        %1690 = sbr.rel (%p1688) target = $region88
      $region87: #{tcrpn_siam_forward.1} parent=83 // pred_region
        %p1691 = scmp.lt.s32.totalorder %s28, 1
        %s1692 = scalar_select %p1691, %s28, 1
        %s1693 = smul.addr %s1692, 8
        %s1694 = smul.addr %s1693, 8
        %s1695 = scalar_lea.vmem %s14, %s1694
      $region88: #{tcrpn_siam_forward.1} parent=83 // pred_fallthru
        _
    $region84: #{tcrpn_siam_forward.1} parent=5 // pred_fallthru
      _
  $region6: #{tcrpn_siam_forward.1} parent=0 // loop_footer
    %s26 = sadd.s32 1, %s22
  $region7: #{tcrpn_siam_forward.1} parent=0 // loop_footer_branch
    %21 = sbr.rel target = $region3
  $region8: #{tcrpn_siam_forward.1} parent=0 // loop_exit
    _

</llo_original>
